<compile_context>
chip_gen: v7x
topology: tpu7x:2x2x1
jax: 0.10.0
libtpu: 0.0.40
codegen_flags: <defaults>
</compile_context>

<pallas_src>
import jax
import jax.numpy as jnp
from jax.experimental import pallas as pl
from jax.experimental.pallas import tpu as pltpu


_MAX_ROWS_TILE = 8192          # big tiles -> fewer grid steps on a mem-bound copy
_MIN_KERNEL_BYTES = 64 * 1024  # below this, launching a kernel is pure overhead


def _round_up(x: int, m: int) -> int:
    return (x + m - 1) // m * m


def _min_sublane(dtype) -> int:
    # dtype-aware second-minor minimum: f32 -> 8, bf16/f16 -> 16, int8/fp8 -> 32.
    return {4: 8, 2: 16, 1: 32}.get(jnp.dtype(dtype).itemsize, 8)


def _copy3_kernel(s_ref, m_ref, t_ref, so_ref, mo_ref, to_ref):
    # Identity copy fused inside the kernel: one read + one write per input.
    so_ref[...] = s_ref[...]
    mo_ref[...] = m_ref[...]
    to_ref[...] = t_ref[...]


def identity_passthrough(sales_by_var, month_rep, trend_rep):
    """Benchmark-only device pass-through of the three forward inputs.

    The reference forward is a no-op after its asserts, so this kernel exists
    purely to give the module something runnable/benchmarkable on device.
    """
    arrs = (sales_by_var, month_rep, trend_rep)

    payload_bytes = sum(a.size * jnp.dtype(a.dtype).itemsize for a in arrs)
    if payload_bytes < _MIN_KERNEL_BYTES:
        # Tiny inputs (the reference's actual regime): no kernel launch.
        return arrs

    n_rows = sales_by_var.shape[0]
    sub = max(_min_sublane(a.dtype) for a in arrs)
    rows_tile = min(_MAX_ROWS_TILE, _round_up(n_rows, sub))
    grid = (pl.cdiv(n_rows, rows_tile),)

    in_specs = [
        pl.BlockSpec((rows_tile, a.shape[1]), lambda i: (i, 0)) for a in arrs
    ]
    out_specs = tuple(
        pl.BlockSpec((rows_tile, a.shape[1]), lambda i: (i, 0)) for a in arrs
    )
    out_shape = tuple(jax.ShapeDtypeStruct(a.shape, a.dtype) for a in arrs)

    return pl.pallas_call(
        _copy3_kernel,
        out_shape=out_shape,
        grid=grid,
        in_specs=in_specs,
        out_specs=out_specs,
        compiler_params=pltpu.CompilerParams(
            dimension_semantics=("parallel",)),
    )(*arrs)


identity_passthrough_jit = jax.jit(identity_passthrough)


class Decomposer:
    """JAX/Pallas port of the PyTorch Decomposer (reference forward is a no-op)."""

    def __init__(self, vars, n_inter, key):
        self.vars = vars
        self.n = len(vars)
        assert self.n == 1
        # Parameters held only for state-parity with the PyTorch module; the
        # reference forward never touches them.
        self.month_vals = jax.random.normal(key, (11,), dtype=jnp.float32)
        self.n_inter = n_inter
        self.p = 0.5 * jnp.ones((n_inter,), dtype=jnp.float32)
        # `self.trend = nn.Parameter` in the reference binds the *class*, not
        # an instantiated tensor — nothing to initialize.

    def forward(self, sales_by_var, month_rep, trend_rep):
        # Exact reference semantics: leading-dim assertions, then return None.
        assert sales_by_var.shape[0] == self.n_inter
        assert month_rep.shape[0] == self.n_inter
        # TODO(synk): the reference forward has no computation; the optional
        # identity_passthrough kernel above exists only for benchmarking.
        return None


if __name__ == "__main__":
    key = jax.random.PRNGKey(0)
    k_sales, k_month, k_trend, k_param = jax.random.split(key, 4)

    n_inter = 2048
    feat = 16

    model = Decomposer(vars=["sales"], n_inter=n_inter, key=k_param)

    sales_by_var = jax.random.normal(k_sales, (n_inter, feat), dtype=jnp.float32)
    month_rep = jax.random.normal(k_month, (n_inter, 11), dtype=jnp.float32)
    trend_rep = jax.random.normal(k_trend, (n_inter, feat), dtype=jnp.float32)

    # Reference-semantics forward: asserts pass, result is None, zero device work.
    assert model.forward(sales_by_var, month_rep, trend_rep) is None

    # Run the benchmark pass-through kernel once and verify it is bit-exact.
    out = identity_passthrough_jit(sales_by_var, month_rep, trend_rep)
    out = jax.block_until_ready(out)
    assert jnp.array_equal(out[0], sales_by_var)
    assert jnp.array_equal(out[1], month_rep)
    assert jnp.array_equal(out[2], trend_rep)

    # Early-return path for tiny inputs (no kernel launch at all).
    small = identity_passthrough_jit(
        sales_by_var[:4], month_rep[:4], trend_rep[:4])
    small = jax.block_until_ready(small)
    assert jnp.array_equal(small[0], sales_by_var[:4])
    assert jnp.array_equal(small[1], month_rep[:4])
    assert jnp.array_equal(small[2], trend_rep[:4])

    print("KERNEL_OK")
</pallas_src>

<mosaic_0001>
module attributes {stable_mosaic.version = 11 : i64} {
  func.func @_copy3_kernel(%arg0: i32, %arg1: memref<2048x16xf32, #tpu.memory_space<vmem>>, %arg2: memref<2048x11xf32, #tpu.memory_space<vmem>>, %arg3: memref<2048x16xf32, #tpu.memory_space<vmem>>, %arg4: memref<2048x16xf32, #tpu.memory_space<vmem>>, %arg5: memref<2048x11xf32, #tpu.memory_space<vmem>>, %arg6: memref<2048x16xf32, #tpu.memory_space<vmem>>) attributes {dimension_semantics = [#tpu.dimension_semantics<parallel>], iteration_bounds = array<i64: 1>, scalar_prefetch = 0 : i64, scratch_operands = 0 : i64, tpu.core_type = #tpu.core_type<tc>, window_params = [{transform_indices = @transform_0, window_bounds = array<i64: 2048, 16>}, {transform_indices = @transform_1, window_bounds = array<i64: 2048, 11>}, {transform_indices = @transform_2, window_bounds = array<i64: 2048, 16>}, {transform_indices = @transform_3, window_bounds = array<i64: 2048, 16>}, {transform_indices = @transform_4, window_bounds = array<i64: 2048, 11>}, {transform_indices = @transform_5, window_bounds = array<i64: 2048, 16>}]} {
    %c0 = arith.constant 0 : index
    %c0_0 = arith.constant 0 : index
    %0 = vector.load %arg1[%c0, %c0_0] : memref<2048x16xf32, #tpu.memory_space<vmem>>, vector<2048x16xf32>
    %c0_1 = arith.constant 0 : index
    %c0_2 = arith.constant 0 : index
    %1 = vector.load %arg4[%c0_1, %c0_2] : memref<2048x16xf32, #tpu.memory_space<vmem>>, vector<2048x16xf32>
    tpu.vector_store %arg4[%c0_1, %c0_2], %0 {strides = array<i32>} : memref<2048x16xf32, #tpu.memory_space<vmem>>, vector<2048x16xf32>,
    %c0_3 = arith.constant 0 : index
    %c0_4 = arith.constant 0 : index
    %2 = vector.load %arg2[%c0_3, %c0_4] : memref<2048x11xf32, #tpu.memory_space<vmem>>, vector<2048x11xf32>
    %c0_5 = arith.constant 0 : index
    %c0_6 = arith.constant 0 : index
    %3 = vector.load %arg5[%c0_5, %c0_6] : memref<2048x11xf32, #tpu.memory_space<vmem>>, vector<2048x11xf32>
    tpu.vector_store %arg5[%c0_5, %c0_6], %2 {strides = array<i32>} : memref<2048x11xf32, #tpu.memory_space<vmem>>, vector<2048x11xf32>,
    %c0_7 = arith.constant 0 : index
    %c0_8 = arith.constant 0 : index
    %4 = vector.load %arg3[%c0_7, %c0_8] : memref<2048x16xf32, #tpu.memory_space<vmem>>, vector<2048x16xf32>
    %c0_9 = arith.constant 0 : index
    %c0_10 = arith.constant 0 : index
    %5 = vector.load %arg6[%c0_9, %c0_10] : memref<2048x16xf32, #tpu.memory_space<vmem>>, vector<2048x16xf32>
    tpu.vector_store %arg6[%c0_9, %c0_10], %4 {strides = array<i32>} : memref<2048x16xf32, #tpu.memory_space<vmem>>, vector<2048x16xf32>,
    return
  }
  func.func @transform_0(%arg0: i32) -> (i32, i32) {
    %c0_i32 = arith.constant 0 : i32
    %c0_i32_0 = arith.constant 0 : i32
    return %arg0, %c0_i32 : i32, i32
  }
  func.func @transform_1(%arg0: i32) -> (i32, i32) {
    %c0_i32 = arith.constant 0 : i32
    %c0_i32_0 = arith.constant 0 : i32
    return %arg0, %c0_i32 : i32, i32
  }
  func.func @transform_2(%arg0: i32) -> (i32, i32) {
    %c0_i32 = arith.constant 0 : i32
    %c0_i32_0 = arith.constant 0 : i32
    return %arg0, %c0_i32 : i32, i32
  }
  func.func @transform_3(%arg0: i32) -> (i32, i32) {
    %c0_i32 = arith.constant 0 : i32
    %c0_i32_0 = arith.constant 0 : i32
    return %arg0, %c0_i32 : i32, i32
  }
  func.func @transform_4(%arg0: i32) -> (i32, i32) {
    %c0_i32 = arith.constant 0 : i32
    %c0_i32_0 = arith.constant 0 : i32
    return %arg0, %c0_i32 : i32, i32
  }
  func.func @transform_5(%arg0: i32) -> (i32, i32) {
    %c0_i32 = arith.constant 0 : i32
    %c0_i32_0 = arith.constant 0 : i32
    return %arg0, %c0_i32 : i32, i32
  }
}

</mosaic_0001>

<llo_original>
// kernel: identity_passthrough.1
$region0: #{identity_passthrough.1}
  #allocation0 [shape = 'u32[]', space=smem, size = 0x4, offset = 0x4, fixed_abs, tag = 'smem constant byte address 0x4 - core index']
  #allocation1 [shape = 'u32[144,128]{1,0:T(1,128)}', space=vmem, size = 0x12000, scoped, tag = 'internal scratch']
  %s0 = inlined_call_operand.vmem [shape: f32[2048,16], index: 0, kind: input, shape index: {}]
  %s1 = inlined_call_operand.vmem [shape: f32[2048,11], index: 1, kind: input, shape index: {}]
  %s2 = inlined_call_operand.vmem [shape: f32[2048,16], index: 2, kind: input, shape index: {}]
  %s3 = inlined_call_operand.vmem [shape: f32[2048,16], index: 3, kind: output, shape index: {0}]
  %s4 = inlined_call_operand.vmem [shape: f32[2048,11], index: 4, kind: output, shape index: {1}]
  %s5 = inlined_call_operand.vmem [shape: f32[2048,16], index: 5, kind: output, shape index: {2}]
  %6 = xla_tuple %s3, %s4, %s5
  %s7 = sld [smem:[#allocation0]]
  $region38: #{identity_passthrough.1} parent=0
    _
  %s9 = ssub.s32 1, %s7
  %s10 = scalar_select 0, %s9, %s7
  // Predicated region
  $region2: #{identity_passthrough.1} parent=0 // pred_check
    _
  $region3: #{identity_passthrough.1} parent=0 // pred_check_branch
    %12 = sbr.rel (0) target = $region5
  $region4: #{identity_passthrough.1} parent=0 // pred_region
    _
  $region5: #{identity_passthrough.1} parent=0 // pred_fallthru
    _
  // Predicated region
  $region6: #{identity_passthrough.1} parent=0 // pred_check
    _
  $region7: #{identity_passthrough.1} parent=0 // pred_check_branch
    %14 = sbr.rel (0) target = $region9
  $region8: #{identity_passthrough.1} parent=0 // pred_region
    _
  $region9: #{identity_passthrough.1} parent=0 // pred_fallthru
    _
  // Predicated region
  $region10: #{identity_passthrough.1} parent=0 // pred_check
    _
  $region11: #{identity_passthrough.1} parent=0 // pred_check_branch
    %16 = sbr.rel (0) target = $region13
  $region12: #{identity_passthrough.1} parent=0 // pred_region
    _
  $region13: #{identity_passthrough.1} parent=0 // pred_fallthru
    _
  %v17 = vld [vmem:[%s0] sm:$0xff]
  %v18 = vld [vmem:[%s0 + $0x8] sm:$0xff]
  %v19 = vld [vmem:[%s0 + $0x10] sm:$0xff]
  %v20 = vld [vmem:[%s0 + $0x18] sm:$0xff]
  %v21 = vld [vmem:[%s0 + $0x20] sm:$0xff]
  %v22 = vld [vmem:[%s0 + $0x28] sm:$0xff]
  %v23 = vld [vmem:[%s0 + $0x30] sm:$0xff]
  %v24 = vld [vmem:[%s0 + $0x38] sm:$0xff]
  %v25 = vld [vmem:[%s0 + $0x40] sm:$0xff]
  %v26 = vld [vmem:[%s0 + $0x48] sm:$0xff]
  %v27 = vld [vmem:[%s0 + $0x50] sm:$0xff]
  %v28 = vld [vmem:[%s0 + $0x58] sm:$0xff]
  %v29 = vld [vmem:[%s0 + $0x60] sm:$0xff]
  %v30 = vld [vmem:[%s0 + $0x68] sm:$0xff]
  %v31 = vld [vmem:[%s0 + $0x70] sm:$0xff]
  %v32 = vld [vmem:[%s0 + $0x78] sm:$0xff]
  %v33 = vld [vmem:[%s0 + $0x80] sm:$0xff]
  %v34 = vld [vmem:[%s0 + $0x88] sm:$0xff]
  %v35 = vld [vmem:[%s0 + $0x90] sm:$0xff]
  %v36 = vld [vmem:[%s0 + $0x98] sm:$0xff]
  %v37 = vld [vmem:[%s0 + $0xa0] sm:$0xff]
  %v38 = vld [vmem:[%s0 + $0xa8] sm:$0xff]
  %v39 = vld [vmem:[%s0 + $0xb0] sm:$0xff]
  %v40 = vld [vmem:[%s0 + $0xb8] sm:$0xff]
  %v41 = vld [vmem:[%s0 + $0xc0] sm:$0xff]
  %v42 = vld [vmem:[%s0 + $0xc8] sm:$0xff]
  %v43 = vld [vmem:[%s0 + $0xd0] sm:$0xff]
  %v44 = vld [vmem:[%s0 + $0xd8] sm:$0xff]
  %v45 = vld [vmem:[%s0 + $0xe0] sm:$0xff]
  %v46 = vld [vmem:[%s0 + $0xe8] sm:$0xff]
  %v47 = vld [vmem:[%s0 + $0xf0] sm:$0xff]
  %v48 = vld [vmem:[%s0 + $0xf8] sm:$0xff]
  %v49 = vld [vmem:[%s0 + $0x100] sm:$0xff]
  %v50 = vld [vmem:[%s0 + $0x108] sm:$0xff]
  %v51 = vld [vmem:[%s0 + $0x110] sm:$0xff]
  %v52 = vld [vmem:[%s0 + $0x118] sm:$0xff]
  %v53 = vld [vmem:[%s0 + $0x120] sm:$0xff]
  %v54 = vld [vmem:[%s0 + $0x128] sm:$0xff]
  %v55 = vld [vmem:[%s0 + $0x130] sm:$0xff]
  %v56 = vld [vmem:[%s0 + $0x138] sm:$0xff]
  %v57 = vld [vmem:[%s0 + $0x140] sm:$0xff]
  %v58 = vld [vmem:[%s0 + $0x148] sm:$0xff]
  %v59 = vld [vmem:[%s0 + $0x150] sm:$0xff]
  %v60 = vld [vmem:[%s0 + $0x158] sm:$0xff]
  %v61 = vld [vmem:[%s0 + $0x160] sm:$0xff]
  %v62 = vld [vmem:[%s0 + $0x168] sm:$0xff]
  %v63 = vld [vmem:[%s0 + $0x170] sm:$0xff]
  %v64 = vld [vmem:[%s0 + $0x178] sm:$0xff]
  %v65 = vld [vmem:[%s0 + $0x180] sm:$0xff]
  %v66 = vld [vmem:[%s0 + $0x188] sm:$0xff]
  %v67 = vld [vmem:[%s0 + $0x190] sm:$0xff]
  %v68 = vld [vmem:[%s0 + $0x198] sm:$0xff]
  %v69 = vld [vmem:[%s0 + $0x1a0] sm:$0xff]
  %v70 = vld [vmem:[%s0 + $0x1a8] sm:$0xff]
  %v71 = vld [vmem:[%s0 + $0x1b0] sm:$0xff]
  %v72 = vld [vmem:[%s0 + $0x1b8] sm:$0xff]
  %v73 = vld [vmem:[%s0 + $0x1c0] sm:$0xff]
  %v74 = vld [vmem:[%s0 + $0x1c8] sm:$0xff]
  %v75 = vld [vmem:[%s0 + $0x1d0] sm:$0xff]
  %v76 = vld [vmem:[%s0 + $0x1d8] sm:$0xff]
  %v77 = vld [vmem:[%s0 + $0x1e0] sm:$0xff]
  %v78 = vld [vmem:[%s0 + $0x1e8] sm:$0xff]
  %v79 = vld [vmem:[%s0 + $0x1f0] sm:$0xff]
  %v80 = vld [vmem:[%s0 + $0x1f8] sm:$0xff]
  %v81 = vld [vmem:[%s0 + $0x200] sm:$0xff]
  %v82 = vld [vmem:[%s0 + $0x208] sm:$0xff]
  %v83 = vld [vmem:[%s0 + $0x210] sm:$0xff]
  %v84 = vld [vmem:[%s0 + $0x218] sm:$0xff]
  %v85 = vld [vmem:[%s0 + $0x220] sm:$0xff]
  %v86 = vld [vmem:[%s0 + $0x228] sm:$0xff]
  %v87 = vld [vmem:[%s0 + $0x230] sm:$0xff]
  %v88 = vld [vmem:[%s0 + $0x238] sm:$0xff]
  %v89 = vld [vmem:[%s0 + $0x240] sm:$0xff]
  %v90 = vld [vmem:[%s0 + $0x248] sm:$0xff]
  %v91 = vld [vmem:[%s0 + $0x250] sm:$0xff]
  %v92 = vld [vmem:[%s0 + $0x258] sm:$0xff]
  %v93 = vld [vmem:[%s0 + $0x260] sm:$0xff]
  %v94 = vld [vmem:[%s0 + $0x268] sm:$0xff]
  %v95 = vld [vmem:[%s0 + $0x270] sm:$0xff]
  %v96 = vld [vmem:[%s0 + $0x278] sm:$0xff]
  %v97 = vld [vmem:[%s0 + $0x280] sm:$0xff]
  %v98 = vld [vmem:[%s0 + $0x288] sm:$0xff]
  %v99 = vld [vmem:[%s0 + $0x290] sm:$0xff]
  %v100 = vld [vmem:[%s0 + $0x298] sm:$0xff]
  %v101 = vld [vmem:[%s0 + $0x2a0] sm:$0xff]
  %v102 = vld [vmem:[%s0 + $0x2a8] sm:$0xff]
  %v103 = vld [vmem:[%s0 + $0x2b0] sm:$0xff]
  %v104 = vld [vmem:[%s0 + $0x2b8] sm:$0xff]
  %v105 = vld [vmem:[%s0 + $0x2c0] sm:$0xff]
  %v106 = vld [vmem:[%s0 + $0x2c8] sm:$0xff]
  %v107 = vld [vmem:[%s0 + $0x2d0] sm:$0xff]
  %v108 = vld [vmem:[%s0 + $0x2d8] sm:$0xff]
  %v109 = vld [vmem:[%s0 + $0x2e0] sm:$0xff]
  %v110 = vld [vmem:[%s0 + $0x2e8] sm:$0xff]
  %v111 = vld [vmem:[%s0 + $0x2f0] sm:$0xff]
  %v112 = vld [vmem:[%s0 + $0x2f8] sm:$0xff]
  %v113 = vld [vmem:[%s0 + $0x300] sm:$0xff]
  %v114 = vld [vmem:[%s0 + $0x308] sm:$0xff]
  %v115 = vld [vmem:[%s0 + $0x310] sm:$0xff]
  %v116 = vld [vmem:[%s0 + $0x318] sm:$0xff]
  %v117 = vld [vmem:[%s0 + $0x320] sm:$0xff]
  %v118 = vld [vmem:[%s0 + $0x328] sm:$0xff]
  %v119 = vld [vmem:[%s0 + $0x330] sm:$0xff]
  %v120 = vld [vmem:[%s0 + $0x338] sm:$0xff]
  %v121 = vld [vmem:[%s0 + $0x340] sm:$0xff]
  %v122 = vld [vmem:[%s0 + $0x348] sm:$0xff]
  %v123 = vld [vmem:[%s0 + $0x350] sm:$0xff]
  %v124 = vld [vmem:[%s0 + $0x358] sm:$0xff]
  %v125 = vld [vmem:[%s0 + $0x360] sm:$0xff]
  %v126 = vld [vmem:[%s0 + $0x368] sm:$0xff]
  %v127 = vld [vmem:[%s0 + $0x370] sm:$0xff]
  %v128 = vld [vmem:[%s0 + $0x378] sm:$0xff]
  %v129 = vld [vmem:[%s0 + $0x380] sm:$0xff]
  %v130 = vld [vmem:[%s0 + $0x388] sm:$0xff]
  %v131 = vld [vmem:[%s0 + $0x390] sm:$0xff]
  %v132 = vld [vmem:[%s0 + $0x398] sm:$0xff]
  %v133 = vld [vmem:[%s0 + $0x3a0] sm:$0xff]
  %v134 = vld [vmem:[%s0 + $0x3a8] sm:$0xff]
  %v135 = vld [vmem:[%s0 + $0x3b0] sm:$0xff]
  %v136 = vld [vmem:[%s0 + $0x3b8] sm:$0xff]
  %v137 = vld [vmem:[%s0 + $0x3c0] sm:$0xff]
  %v138 = vld [vmem:[%s0 + $0x3c8] sm:$0xff]
  %v139 = vld [vmem:[%s0 + $0x3d0] sm:$0xff]
  %v140 = vld [vmem:[%s0 + $0x3d8] sm:$0xff]
  %v141 = vld [vmem:[%s0 + $0x3e0] sm:$0xff]
  %v142 = vld [vmem:[%s0 + $0x3e8] sm:$0xff]
  %v143 = vld [vmem:[%s0 + $0x3f0] sm:$0xff]
  %v144 = vld [vmem:[%s0 + $0x3f8] sm:$0xff]
  %v145 = vld [vmem:[%s0 + $0x400] sm:$0xff]
  %v146 = vld [vmem:[%s0 + $0x408] sm:$0xff]
  %v147 = vld [vmem:[%s0 + $0x410] sm:$0xff]
  %v148 = vld [vmem:[%s0 + $0x418] sm:$0xff]
  %v149 = vld [vmem:[%s0 + $0x420] sm:$0xff]
  %v150 = vld [vmem:[%s0 + $0x428] sm:$0xff]
  %v151 = vld [vmem:[%s0 + $0x430] sm:$0xff]
  %v152 = vld [vmem:[%s0 + $0x438] sm:$0xff]
  %v153 = vld [vmem:[%s0 + $0x440] sm:$0xff]
  %v154 = vld [vmem:[%s0 + $0x448] sm:$0xff]
  %v155 = vld [vmem:[%s0 + $0x450] sm:$0xff]
  %v156 = vld [vmem:[%s0 + $0x458] sm:$0xff]
  %v157 = vld [vmem:[%s0 + $0x460] sm:$0xff]
  %v158 = vld [vmem:[%s0 + $0x468] sm:$0xff]
  %v159 = vld [vmem:[%s0 + $0x470] sm:$0xff]
  %v160 = vld [vmem:[%s0 + $0x478] sm:$0xff]
  %v161 = vld [vmem:[%s0 + $0x480] sm:$0xff]
  %v162 = vld [vmem:[%s0 + $0x488] sm:$0xff]
  %v163 = vld [vmem:[%s0 + $0x490] sm:$0xff]
  %v164 = vld [vmem:[%s0 + $0x498] sm:$0xff]
  %v165 = vld [vmem:[%s0 + $0x4a0] sm:$0xff]
  %v166 = vld [vmem:[%s0 + $0x4a8] sm:$0xff]
  %v167 = vld [vmem:[%s0 + $0x4b0] sm:$0xff]
  %v168 = vld [vmem:[%s0 + $0x4b8] sm:$0xff]
  %v169 = vld [vmem:[%s0 + $0x4c0] sm:$0xff]
  %v170 = vld [vmem:[%s0 + $0x4c8] sm:$0xff]
  %v171 = vld [vmem:[%s0 + $0x4d0] sm:$0xff]
  %v172 = vld [vmem:[%s0 + $0x4d8] sm:$0xff]
  %v173 = vld [vmem:[%s0 + $0x4e0] sm:$0xff]
  %v174 = vld [vmem:[%s0 + $0x4e8] sm:$0xff]
  %v175 = vld [vmem:[%s0 + $0x4f0] sm:$0xff]
  %v176 = vld [vmem:[%s0 + $0x4f8] sm:$0xff]
  %v177 = vld [vmem:[%s0 + $0x500] sm:$0xff]
  %v178 = vld [vmem:[%s0 + $0x508] sm:$0xff]
  %v179 = vld [vmem:[%s0 + $0x510] sm:$0xff]
  %v180 = vld [vmem:[%s0 + $0x518] sm:$0xff]
  %v181 = vld [vmem:[%s0 + $0x520] sm:$0xff]
  %v182 = vld [vmem:[%s0 + $0x528] sm:$0xff]
  %v183 = vld [vmem:[%s0 + $0x530] sm:$0xff]
  %v184 = vld [vmem:[%s0 + $0x538] sm:$0xff]
  %v185 = vld [vmem:[%s0 + $0x540] sm:$0xff]
  %v186 = vld [vmem:[%s0 + $0x548] sm:$0xff]
  %v187 = vld [vmem:[%s0 + $0x550] sm:$0xff]
  %v188 = vld [vmem:[%s0 + $0x558] sm:$0xff]
  %v189 = vld [vmem:[%s0 + $0x560] sm:$0xff]
  %v190 = vld [vmem:[%s0 + $0x568] sm:$0xff]
  %v191 = vld [vmem:[%s0 + $0x570] sm:$0xff]
  %v192 = vld [vmem:[%s0 + $0x578] sm:$0xff]
  %v193 = vld [vmem:[%s0 + $0x580] sm:$0xff]
  %v194 = vld [vmem:[%s0 + $0x588] sm:$0xff]
  %v195 = vld [vmem:[%s0 + $0x590] sm:$0xff]
  %v196 = vld [vmem:[%s0 + $0x598] sm:$0xff]
  %v197 = vld [vmem:[%s0 + $0x5a0] sm:$0xff]
  %v198 = vld [vmem:[%s0 + $0x5a8] sm:$0xff]
  %v199 = vld [vmem:[%s0 + $0x5b0] sm:$0xff]
  %v200 = vld [vmem:[%s0 + $0x5b8] sm:$0xff]
  %v201 = vld [vmem:[%s0 + $0x5c0] sm:$0xff]
  %v202 = vld [vmem:[%s0 + $0x5c8] sm:$0xff]
  %v203 = vld [vmem:[%s0 + $0x5d0] sm:$0xff]
  %v204 = vld [vmem:[%s0 + $0x5d8] sm:$0xff]
  %v205 = vld [vmem:[%s0 + $0x5e0] sm:$0xff]
  %v206 = vld [vmem:[%s0 + $0x5e8] sm:$0xff]
  %v207 = vld [vmem:[%s0 + $0x5f0] sm:$0xff]
  %v208 = vld [vmem:[%s0 + $0x5f8] sm:$0xff]
  %v209 = vld [vmem:[%s0 + $0x600] sm:$0xff]
  %v210 = vld [vmem:[%s0 + $0x608] sm:$0xff]
  %v211 = vld [vmem:[%s0 + $0x610] sm:$0xff]
  %v212 = vld [vmem:[%s0 + $0x618] sm:$0xff]
  %v213 = vld [vmem:[%s0 + $0x620] sm:$0xff]
  %v214 = vld [vmem:[%s0 + $0x628] sm:$0xff]
  %v215 = vld [vmem:[%s0 + $0x630] sm:$0xff]
  %v216 = vld [vmem:[%s0 + $0x638] sm:$0xff]
  %v217 = vld [vmem:[%s0 + $0x640] sm:$0xff]
  %v218 = vld [vmem:[%s0 + $0x648] sm:$0xff]
  %v219 = vld [vmem:[%s0 + $0x650] sm:$0xff]
  %v220 = vld [vmem:[%s0 + $0x658] sm:$0xff]
  %v221 = vld [vmem:[%s0 + $0x660] sm:$0xff]
  %v222 = vld [vmem:[%s0 + $0x668] sm:$0xff]
  %v223 = vld [vmem:[%s0 + $0x670] sm:$0xff]
  %v224 = vld [vmem:[%s0 + $0x678] sm:$0xff]
  %v225 = vld [vmem:[%s0 + $0x680] sm:$0xff]
  %v226 = vld [vmem:[%s0 + $0x688] sm:$0xff]
  %v227 = vld [vmem:[%s0 + $0x690] sm:$0xff]
  %v228 = vld [vmem:[%s0 + $0x698] sm:$0xff]
  %v229 = vld [vmem:[%s0 + $0x6a0] sm:$0xff]
  %v230 = vld [vmem:[%s0 + $0x6a8] sm:$0xff]
  %v231 = vld [vmem:[%s0 + $0x6b0] sm:$0xff]
  %v232 = vld [vmem:[%s0 + $0x6b8] sm:$0xff]
  %v233 = vld [vmem:[%s0 + $0x6c0] sm:$0xff]
  %v234 = vld [vmem:[%s0 + $0x6c8] sm:$0xff]
  %v235 = vld [vmem:[%s0 + $0x6d0] sm:$0xff]
  %v236 = vld [vmem:[%s0 + $0x6d8] sm:$0xff]
  %v237 = vld [vmem:[%s0 + $0x6e0] sm:$0xff]
  %v238 = vld [vmem:[%s0 + $0x6e8] sm:$0xff]
  %v239 = vld [vmem:[%s0 + $0x6f0] sm:$0xff]
  %v240 = vld [vmem:[%s0 + $0x6f8] sm:$0xff]
  %v241 = vld [vmem:[%s0 + $0x700] sm:$0xff]
  %v242 = vld [vmem:[%s0 + $0x708] sm:$0xff]
  %v243 = vld [vmem:[%s0 + $0x710] sm:$0xff]
  %v244 = vld [vmem:[%s0 + $0x718] sm:$0xff]
  %v245 = vld [vmem:[%s0 + $0x720] sm:$0xff]
  %v246 = vld [vmem:[%s0 + $0x728] sm:$0xff]
  %v247 = vld [vmem:[%s0 + $0x730] sm:$0xff]
  %v248 = vld [vmem:[%s0 + $0x738] sm:$0xff]
  %v249 = vld [vmem:[%s0 + $0x740] sm:$0xff]
  %v250 = vld [vmem:[%s0 + $0x748] sm:$0xff]
  %v251 = vld [vmem:[%s0 + $0x750] sm:$0xff]
  %v252 = vld [vmem:[%s0 + $0x758] sm:$0xff]
  %v253 = vld [vmem:[%s0 + $0x760] sm:$0xff]
  %v254 = vld [vmem:[%s0 + $0x768] sm:$0xff]
  %v255 = vld [vmem:[%s0 + $0x770] sm:$0xff]
  %v256 = vld [vmem:[%s0 + $0x778] sm:$0xff]
  %v257 = vld [vmem:[%s0 + $0x780] sm:$0xff]
  %v258 = vld [vmem:[%s0 + $0x788] sm:$0xff]
  %v259 = vld [vmem:[%s0 + $0x790] sm:$0xff]
  %v260 = vld [vmem:[%s0 + $0x798] sm:$0xff]
  %v261 = vld [vmem:[%s0 + $0x7a0] sm:$0xff]
  %v262 = vld [vmem:[%s0 + $0x7a8] sm:$0xff]
  %v263 = vld [vmem:[%s0 + $0x7b0] sm:$0xff]
  %v264 = vld [vmem:[%s0 + $0x7b8] sm:$0xff]
  %v265 = vld [vmem:[%s0 + $0x7c0] sm:$0xff]
  %v266 = vld [vmem:[%s0 + $0x7c8] sm:$0xff]
  %v267 = vld [vmem:[%s0 + $0x7d0] sm:$0xff]
  %v268 = vld [vmem:[%s0 + $0x7d8] sm:$0xff]
  %v269 = vld [vmem:[%s0 + $0x7e0] sm:$0xff]
  %v270 = vld [vmem:[%s0 + $0x7e8] sm:$0xff]
  %v271 = vld [vmem:[%s0 + $0x7f0] sm:$0xff]
  %v272 = vld [vmem:[%s0 + $0x7f8] sm:$0xff]
  %vm273 = vcmask 130048
  %274 = vst.msk [vmem:[%s3] sm:$0xff] %vm273, %v17
  %275 = vst.msk [vmem:[%s3 + $0x8] sm:$0xff] %vm273, %v18
  %276 = vst.msk [vmem:[%s3 + $0x10] sm:$0xff] %vm273, %v19
  %277 = vst.msk [vmem:[%s3 + $0x18] sm:$0xff] %vm273, %v20
  %278 = vst.msk [vmem:[%s3 + $0x20] sm:$0xff] %vm273, %v21
  %279 = vst.msk [vmem:[%s3 + $0x28] sm:$0xff] %vm273, %v22
  %280 = vst.msk [vmem:[%s3 + $0x30] sm:$0xff] %vm273, %v23
  %281 = vst.msk [vmem:[%s3 + $0x38] sm:$0xff] %vm273, %v24
  %282 = vst.msk [vmem:[%s3 + $0x40] sm:$0xff] %vm273, %v25
  %283 = vst.msk [vmem:[%s3 + $0x48] sm:$0xff] %vm273, %v26
  %284 = vst.msk [vmem:[%s3 + $0x50] sm:$0xff] %vm273, %v27
  %285 = vst.msk [vmem:[%s3 + $0x58] sm:$0xff] %vm273, %v28
  %286 = vst.msk [vmem:[%s3 + $0x60] sm:$0xff] %vm273, %v29
  %287 = vst.msk [vmem:[%s3 + $0x68] sm:$0xff] %vm273, %v30
  %288 = vst.msk [vmem:[%s3 + $0x70] sm:$0xff] %vm273, %v31
  %289 = vst.msk [vmem:[%s3 + $0x78] sm:$0xff] %vm273, %v32
  %290 = vst.msk [vmem:[%s3 + $0x80] sm:$0xff] %vm273, %v33
  %291 = vst.msk [vmem:[%s3 + $0x88] sm:$0xff] %vm273, %v34
  %292 = vst.msk [vmem:[%s3 + $0x90] sm:$0xff] %vm273, %v35
  %293 = vst.msk [vmem:[%s3 + $0x98] sm:$0xff] %vm273, %v36
  %294 = vst.msk [vmem:[%s3 + $0xa0] sm:$0xff] %vm273, %v37
  %295 = vst.msk [vmem:[%s3 + $0xa8] sm:$0xff] %vm273, %v38
  %296 = vst.msk [vmem:[%s3 + $0xb0] sm:$0xff] %vm273, %v39
  %297 = vst.msk [vmem:[%s3 + $0xb8] sm:$0xff] %vm273, %v40
  %298 = vst.msk [vmem:[%s3 + $0xc0] sm:$0xff] %vm273, %v41
  %299 = vst.msk [vmem:[%s3 + $0xc8] sm:$0xff] %vm273, %v42
  %300 = vst.msk [vmem:[%s3 + $0xd0] sm:$0xff] %vm273, %v43
  %301 = vst.msk [vmem:[%s3 + $0xd8] sm:$0xff] %vm273, %v44
  %302 = vst.msk [vmem:[%s3 + $0xe0] sm:$0xff] %vm273, %v45
  %303 = vst.msk [vmem:[%s3 + $0xe8] sm:$0xff] %vm273, %v46
  %304 = vst.msk [vmem:[%s3 + $0xf0] sm:$0xff] %vm273, %v47
  %305 = vst.msk [vmem:[%s3 + $0xf8] sm:$0xff] %vm273, %v48
  %306 = vst.msk [vmem:[%s3 + $0x100] sm:$0xff] %vm273, %v49
  %307 = vst.msk [vmem:[%s3 + $0x108] sm:$0xff] %vm273, %v50
  %308 = vst.msk [vmem:[%s3 + $0x110] sm:$0xff] %vm273, %v51
  %309 = vst.msk [vmem:[%s3 + $0x118] sm:$0xff] %vm273, %v52
  %310 = vst.msk [vmem:[%s3 + $0x120] sm:$0xff] %vm273, %v53
  %311 = vst.msk [vmem:[%s3 + $0x128] sm:$0xff] %vm273, %v54
  %312 = vst.msk [vmem:[%s3 + $0x130] sm:$0xff] %vm273, %v55
  %313 = vst.msk [vmem:[%s3 + $0x138] sm:$0xff] %vm273, %v56
  %314 = vst.msk [vmem:[%s3 + $0x140] sm:$0xff] %vm273, %v57
  %315 = vst.msk [vmem:[%s3 + $0x148] sm:$0xff] %vm273, %v58
  %316 = vst.msk [vmem:[%s3 + $0x150] sm:$0xff] %vm273, %v59
  %317 = vst.msk [vmem:[%s3 + $0x158] sm:$0xff] %vm273, %v60
  %318 = vst.msk [vmem:[%s3 + $0x160] sm:$0xff] %vm273, %v61
  %319 = vst.msk [vmem:[%s3 + $0x168] sm:$0xff] %vm273, %v62
  %320 = vst.msk [vmem:[%s3 + $0x170] sm:$0xff] %vm273, %v63
  %321 = vst.msk [vmem:[%s3 + $0x178] sm:$0xff] %vm273, %v64
  %322 = vst.msk [vmem:[%s3 + $0x180] sm:$0xff] %vm273, %v65
  %323 = vst.msk [vmem:[%s3 + $0x188] sm:$0xff] %vm273, %v66
  %324 = vst.msk [vmem:[%s3 + $0x190] sm:$0xff] %vm273, %v67
  %325 = vst.msk [vmem:[%s3 + $0x198] sm:$0xff] %vm273, %v68
  %326 = vst.msk [vmem:[%s3 + $0x1a0] sm:$0xff] %vm273, %v69
  %327 = vst.msk [vmem:[%s3 + $0x1a8] sm:$0xff] %vm273, %v70
  %328 = vst.msk [vmem:[%s3 + $0x1b0] sm:$0xff] %vm273, %v71
  %329 = vst.msk [vmem:[%s3 + $0x1b8] sm:$0xff] %vm273, %v72
  %330 = vst.msk [vmem:[%s3 + $0x1c0] sm:$0xff] %vm273, %v73
  %331 = vst.msk [vmem:[%s3 + $0x1c8] sm:$0xff] %vm273, %v74
  %332 = vst.msk [vmem:[%s3 + $0x1d0] sm:$0xff] %vm273, %v75
  %333 = vst.msk [vmem:[%s3 + $0x1d8] sm:$0xff] %vm273, %v76
  %334 = vst.msk [vmem:[%s3 + $0x1e0] sm:$0xff] %vm273, %v77
  %335 = vst.msk [vmem:[%s3 + $0x1e8] sm:$0xff] %vm273, %v78
  %336 = vst.msk [vmem:[%s3 + $0x1f0] sm:$0xff] %vm273, %v79
  %337 = vst.msk [vmem:[%s3 + $0x1f8] sm:$0xff] %vm273, %v80
  %338 = vst.msk [vmem:[%s3 + $0x200] sm:$0xff] %vm273, %v81
  %339 = vst.msk [vmem:[%s3 + $0x208] sm:$0xff] %vm273, %v82
  %340 = vst.msk [vmem:[%s3 + $0x210] sm:$0xff] %vm273, %v83
  %341 = vst.msk [vmem:[%s3 + $0x218] sm:$0xff] %vm273, %v84
  %342 = vst.msk [vmem:[%s3 + $0x220] sm:$0xff] %vm273, %v85
  %343 = vst.msk [vmem:[%s3 + $0x228] sm:$0xff] %vm273, %v86
  %344 = vst.msk [vmem:[%s3 + $0x230] sm:$0xff] %vm273, %v87
  %345 = vst.msk [vmem:[%s3 + $0x238] sm:$0xff] %vm273, %v88
  %346 = vst.msk [vmem:[%s3 + $0x240] sm:$0xff] %vm273, %v89
  %347 = vst.msk [vmem:[%s3 + $0x248] sm:$0xff] %vm273, %v90
  %348 = vst.msk [vmem:[%s3 + $0x250] sm:$0xff] %vm273, %v91
  %349 = vst.msk [vmem:[%s3 + $0x258] sm:$0xff] %vm273, %v92
  %350 = vst.msk [vmem:[%s3 + $0x260] sm:$0xff] %vm273, %v93
  %351 = vst.msk [vmem:[%s3 + $0x268] sm:$0xff] %vm273, %v94
  %352 = vst.msk [vmem:[%s3 + $0x270] sm:$0xff] %vm273, %v95
  %353 = vst.msk [vmem:[%s3 + $0x278] sm:$0xff] %vm273, %v96
  %354 = vst.msk [vmem:[%s3 + $0x280] sm:$0xff] %vm273, %v97
  %355 = vst.msk [vmem:[%s3 + $0x288] sm:$0xff] %vm273, %v98
  %356 = vst.msk [vmem:[%s3 + $0x290] sm:$0xff] %vm273, %v99
  %357 = vst.msk [vmem:[%s3 + $0x298] sm:$0xff] %vm273, %v100
  %358 = vst.msk [vmem:[%s3 + $0x2a0] sm:$0xff] %vm273, %v101
  %359 = vst.msk [vmem:[%s3 + $0x2a8] sm:$0xff] %vm273, %v102
  %360 = vst.msk [vmem:[%s3 + $0x2b0] sm:$0xff] %vm273, %v103
  %361 = vst.msk [vmem:[%s3 + $0x2b8] sm:$0xff] %vm273, %v104
  %362 = vst.msk [vmem:[%s3 + $0x2c0] sm:$0xff] %vm273, %v105
  %363 = vst.msk [vmem:[%s3 + $0x2c8] sm:$0xff] %vm273, %v106
  %364 = vst.msk [vmem:[%s3 + $0x2d0] sm:$0xff] %vm273, %v107
  %365 = vst.msk [vmem:[%s3 + $0x2d8] sm:$0xff] %vm273, %v108
  %366 = vst.msk [vmem:[%s3 + $0x2e0] sm:$0xff] %vm273, %v109
  %367 = vst.msk [vmem:[%s3 + $0x2e8] sm:$0xff] %vm273, %v110
  %368 = vst.msk [vmem:[%s3 + $0x2f0] sm:$0xff] %vm273, %v111
  %369 = vst.msk [vmem:[%s3 + $0x2f8] sm:$0xff] %vm273, %v112
  %370 = vst.msk [vmem:[%s3 + $0x300] sm:$0xff] %vm273, %v113
  %371 = vst.msk [vmem:[%s3 + $0x308] sm:$0xff] %vm273, %v114
  %372 = vst.msk [vmem:[%s3 + $0x310] sm:$0xff] %vm273, %v115
  %373 = vst.msk [vmem:[%s3 + $0x318] sm:$0xff] %vm273, %v116
  %374 = vst.msk [vmem:[%s3 + $0x320] sm:$0xff] %vm273, %v117
  %375 = vst.msk [vmem:[%s3 + $0x328] sm:$0xff] %vm273, %v118
  %376 = vst.msk [vmem:[%s3 + $0x330] sm:$0xff] %vm273, %v119
  %377 = vst.msk [vmem:[%s3 + $0x338] sm:$0xff] %vm273, %v120
  %378 = vst.msk [vmem:[%s3 + $0x340] sm:$0xff] %vm273, %v121
  %379 = vst.msk [vmem:[%s3 + $0x348] sm:$0xff] %vm273, %v122
  %380 = vst.msk [vmem:[%s3 + $0x350] sm:$0xff] %vm273, %v123
  %381 = vst.msk [vmem:[%s3 + $0x358] sm:$0xff] %vm273, %v124
  %382 = vst.msk [vmem:[%s3 + $0x360] sm:$0xff] %vm273, %v125
  %383 = vst.msk [vmem:[%s3 + $0x368] sm:$0xff] %vm273, %v126
  %384 = vst.msk [vmem:[%s3 + $0x370] sm:$0xff] %vm273, %v127
  %385 = vst.msk [vmem:[%s3 + $0x378] sm:$0xff] %vm273, %v128
  %386 = vst.msk [vmem:[%s3 + $0x380] sm:$0xff] %vm273, %v129
  %387 = vst.msk [vmem:[%s3 + $0x388] sm:$0xff] %vm273, %v130
  %388 = vst.msk [vmem:[%s3 + $0x390] sm:$0xff] %vm273, %v131
  %389 = vst.msk [vmem:[%s3 + $0x398] sm:$0xff] %vm273, %v132
  %390 = vst.msk [vmem:[%s3 + $0x3a0] sm:$0xff] %vm273, %v133
  %391 = vst.msk [vmem:[%s3 + $0x3a8] sm:$0xff] %vm273, %v134
  %392 = vst.msk [vmem:[%s3 + $0x3b0] sm:$0xff] %vm273, %v135
  %393 = vst.msk [vmem:[%s3 + $0x3b8] sm:$0xff] %vm273, %v136
  %394 = vst.msk [vmem:[%s3 + $0x3c0] sm:$0xff] %vm273, %v137
  %395 = vst.msk [vmem:[%s3 + $0x3c8] sm:$0xff] %vm273, %v138
  %396 = vst.msk [vmem:[%s3 + $0x3d0] sm:$0xff] %vm273, %v139
  %397 = vst.msk [vmem:[%s3 + $0x3d8] sm:$0xff] %vm273, %v140
  %398 = vst.msk [vmem:[%s3 + $0x3e0] sm:$0xff] %vm273, %v141
  %399 = vst.msk [vmem:[%s3 + $0x3e8] sm:$0xff] %vm273, %v142
  %400 = vst.msk [vmem:[%s3 + $0x3f0] sm:$0xff] %vm273, %v143
  %401 = vst.msk [vmem:[%s3 + $0x3f8] sm:$0xff] %vm273, %v144
  %402 = vst.msk [vmem:[%s3 + $0x400] sm:$0xff] %vm273, %v145
  %403 = vst.msk [vmem:[%s3 + $0x408] sm:$0xff] %vm273, %v146
  %404 = vst.msk [vmem:[%s3 + $0x410] sm:$0xff] %vm273, %v147
  %405 = vst.msk [vmem:[%s3 + $0x418] sm:$0xff] %vm273, %v148
  %406 = vst.msk [vmem:[%s3 + $0x420] sm:$0xff] %vm273, %v149
  %407 = vst.msk [vmem:[%s3 + $0x428] sm:$0xff] %vm273, %v150
  %408 = vst.msk [vmem:[%s3 + $0x430] sm:$0xff] %vm273, %v151
  %409 = vst.msk [vmem:[%s3 + $0x438] sm:$0xff] %vm273, %v152
  %410 = vst.msk [vmem:[%s3 + $0x440] sm:$0xff] %vm273, %v153
  %411 = vst.msk [vmem:[%s3 + $0x448] sm:$0xff] %vm273, %v154
  %412 = vst.msk [vmem:[%s3 + $0x450] sm:$0xff] %vm273, %v155
  %413 = vst.msk [vmem:[%s3 + $0x458] sm:$0xff] %vm273, %v156
  %414 = vst.msk [vmem:[%s3 + $0x460] sm:$0xff] %vm273, %v157
  %415 = vst.msk [vmem:[%s3 + $0x468] sm:$0xff] %vm273, %v158
  %416 = vst.msk [vmem:[%s3 + $0x470] sm:$0xff] %vm273, %v159
  %417 = vst.msk [vmem:[%s3 + $0x478] sm:$0xff] %vm273, %v160
  %418 = vst.msk [vmem:[%s3 + $0x480] sm:$0xff] %vm273, %v161
  %419 = vst.msk [vmem:[%s3 + $0x488] sm:$0xff] %vm273, %v162
  %420 = vst.msk [vmem:[%s3 + $0x490] sm:$0xff] %vm273, %v163
  %421 = vst.msk [vmem:[%s3 + $0x498] sm:$0xff] %vm273, %v164
  %422 = vst.msk [vmem:[%s3 + $0x4a0] sm:$0xff] %vm273, %v165
  %423 = vst.msk [vmem:[%s3 + $0x4a8] sm:$0xff] %vm273, %v166
  %424 = vst.msk [vmem:[%s3 + $0x4b0] sm:$0xff] %vm273, %v167
  %425 = vst.msk [vmem:[%s3 + $0x4b8] sm:$0xff] %vm273, %v168
  %426 = vst.msk [vmem:[%s3 + $0x4c0] sm:$0xff] %vm273, %v169
  %427 = vst.msk [vmem:[%s3 + $0x4c8] sm:$0xff] %vm273, %v170
  %428 = vst.msk [vmem:[%s3 + $0x4d0] sm:$0xff] %vm273, %v171
  %429 = vst.msk [vmem:[%s3 + $0x4d8] sm:$0xff] %vm273, %v172
  %430 = vst.msk [vmem:[%s3 + $0x4e0] sm:$0xff] %vm273, %v173
  %431 = vst.msk [vmem:[%s3 + $0x4e8] sm:$0xff] %vm273, %v174
  %432 = vst.msk [vmem:[%s3 + $0x4f0] sm:$0xff] %vm273, %v175
  %433 = vst.msk [vmem:[%s3 + $0x4f8] sm:$0xff] %vm273, %v176
  %434 = vst.msk [vmem:[%s3 + $0x500] sm:$0xff] %vm273, %v177
  %435 = vst.msk [vmem:[%s3 + $0x508] sm:$0xff] %vm273, %v178
  %436 = vst.msk [vmem:[%s3 + $0x510] sm:$0xff] %vm273, %v179
  %437 = vst.msk [vmem:[%s3 + $0x518] sm:$0xff] %vm273, %v180
  %438 = vst.msk [vmem:[%s3 + $0x520] sm:$0xff] %vm273, %v181
  %439 = vst.msk [vmem:[%s3 + $0x528] sm:$0xff] %vm273, %v182
  %440 = vst.msk [vmem:[%s3 + $0x530] sm:$0xff] %vm273, %v183
  %441 = vst.msk [vmem:[%s3 + $0x538] sm:$0xff] %vm273, %v184
  %442 = vst.msk [vmem:[%s3 + $0x540] sm:$0xff] %vm273, %v185
  %443 = vst.msk [vmem:[%s3 + $0x548] sm:$0xff] %vm273, %v186
  %444 = vst.msk [vmem:[%s3 + $0x550] sm:$0xff] %vm273, %v187
  %445 = vst.msk [vmem:[%s3 + $0x558] sm:$0xff] %vm273, %v188
  %446 = vst.msk [vmem:[%s3 + $0x560] sm:$0xff] %vm273, %v189
  %447 = vst.msk [vmem:[%s3 + $0x568] sm:$0xff] %vm273, %v190
  %448 = vst.msk [vmem:[%s3 + $0x570] sm:$0xff] %vm273, %v191
  %449 = vst.msk [vmem:[%s3 + $0x578] sm:$0xff] %vm273, %v192
  %450 = vst.msk [vmem:[%s3 + $0x580] sm:$0xff] %vm273, %v193
  %451 = vst.msk [vmem:[%s3 + $0x588] sm:$0xff] %vm273, %v194
  %452 = vst.msk [vmem:[%s3 + $0x590] sm:$0xff] %vm273, %v195
  %453 = vst.msk [vmem:[%s3 + $0x598] sm:$0xff] %vm273, %v196
  %454 = vst.msk [vmem:[%s3 + $0x5a0] sm:$0xff] %vm273, %v197
  %455 = vst.msk [vmem:[%s3 + $0x5a8] sm:$0xff] %vm273, %v198
  %456 = vst.msk [vmem:[%s3 + $0x5b0] sm:$0xff] %vm273, %v199
  %457 = vst.msk [vmem:[%s3 + $0x5b8] sm:$0xff] %vm273, %v200
  %458 = vst.msk [vmem:[%s3 + $0x5c0] sm:$0xff] %vm273, %v201
  %459 = vst.msk [vmem:[%s3 + $0x5c8] sm:$0xff] %vm273, %v202
  %460 = vst.msk [vmem:[%s3 + $0x5d0] sm:$0xff] %vm273, %v203
  %461 = vst.msk [vmem:[%s3 + $0x5d8] sm:$0xff] %vm273, %v204
  %462 = vst.msk [vmem:[%s3 + $0x5e0] sm:$0xff] %vm273, %v205
  %463 = vst.msk [vmem:[%s3 + $0x5e8] sm:$0xff] %vm273, %v206
  %464 = vst.msk [vmem:[%s3 + $0x5f0] sm:$0xff] %vm273, %v207
  %465 = vst.msk [vmem:[%s3 + $0x5f8] sm:$0xff] %vm273, %v208
  %466 = vst.msk [vmem:[%s3 + $0x600] sm:$0xff] %vm273, %v209
  %467 = vst.msk [vmem:[%s3 + $0x608] sm:$0xff] %vm273, %v210
  %468 = vst.msk [vmem:[%s3 + $0x610] sm:$0xff] %vm273, %v211
  %469 = vst.msk [vmem:[%s3 + $0x618] sm:$0xff] %vm273, %v212
  %470 = vst.msk [vmem:[%s3 + $0x620] sm:$0xff] %vm273, %v213
  %471 = vst.msk [vmem:[%s3 + $0x628] sm:$0xff] %vm273, %v214
  %472 = vst.msk [vmem:[%s3 + $0x630] sm:$0xff] %vm273, %v215
  %473 = vst.msk [vmem:[%s3 + $0x638] sm:$0xff] %vm273, %v216
  %474 = vst.msk [vmem:[%s3 + $0x640] sm:$0xff] %vm273, %v217
  %475 = vst.msk [vmem:[%s3 + $0x648] sm:$0xff] %vm273, %v218
  %476 = vst.msk [vmem:[%s3 + $0x650] sm:$0xff] %vm273, %v219
  %477 = vst.msk [vmem:[%s3 + $0x658] sm:$0xff] %vm273, %v220
  %478 = vst.msk [vmem:[%s3 + $0x660] sm:$0xff] %vm273, %v221
  %479 = vst.msk [vmem:[%s3 + $0x668] sm:$0xff] %vm273, %v222
  %480 = vst.msk [vmem:[%s3 + $0x670] sm:$0xff] %vm273, %v223
  %481 = vst.msk [vmem:[%s3 + $0x678] sm:$0xff] %vm273, %v224
  %482 = vst.msk [vmem:[%s3 + $0x680] sm:$0xff] %vm273, %v225
  %483 = vst.msk [vmem:[%s3 + $0x688] sm:$0xff] %vm273, %v226
  %484 = vst.msk [vmem:[%s3 + $0x690] sm:$0xff] %vm273, %v227
  %485 = vst.msk [vmem:[%s3 + $0x698] sm:$0xff] %vm273, %v228
  %486 = vst.msk [vmem:[%s3 + $0x6a0] sm:$0xff] %vm273, %v229
  %487 = vst.msk [vmem:[%s3 + $0x6a8] sm:$0xff] %vm273, %v230
  %488 = vst.msk [vmem:[%s3 + $0x6b0] sm:$0xff] %vm273, %v231
  %489 = vst.msk [vmem:[%s3 + $0x6b8] sm:$0xff] %vm273, %v232
  %490 = vst.msk [vmem:[%s3 + $0x6c0] sm:$0xff] %vm273, %v233
  %491 = vst.msk [vmem:[%s3 + $0x6c8] sm:$0xff] %vm273, %v234
  %492 = vst.msk [vmem:[%s3 + $0x6d0] sm:$0xff] %vm273, %v235
  %493 = vst.msk [vmem:[%s3 + $0x6d8] sm:$0xff] %vm273, %v236
  %494 = vst.msk [vmem:[%s3 + $0x6e0] sm:$0xff] %vm273, %v237
  %495 = vst.msk [vmem:[%s3 + $0x6e8] sm:$0xff] %vm273, %v238
  %496 = vst.msk [vmem:[%s3 + $0x6f0] sm:$0xff] %vm273, %v239
  %497 = vst.msk [vmem:[%s3 + $0x6f8] sm:$0xff] %vm273, %v240
  %498 = vst.msk [vmem:[%s3 + $0x700] sm:$0xff] %vm273, %v241
  %499 = vst.msk [vmem:[%s3 + $0x708] sm:$0xff] %vm273, %v242
  %500 = vst.msk [vmem:[%s3 + $0x710] sm:$0xff] %vm273, %v243
  %501 = vst.msk [vmem:[%s3 + $0x718] sm:$0xff] %vm273, %v244
  %502 = vst.msk [vmem:[%s3 + $0x720] sm:$0xff] %vm273, %v245
  %503 = vst.msk [vmem:[%s3 + $0x728] sm:$0xff] %vm273, %v246
  %504 = vst.msk [vmem:[%s3 + $0x730] sm:$0xff] %vm273, %v247
  %505 = vst.msk [vmem:[%s3 + $0x738] sm:$0xff] %vm273, %v248
  %506 = vst.msk [vmem:[%s3 + $0x740] sm:$0xff] %vm273, %v249
  %507 = vst.msk [vmem:[%s3 + $0x748] sm:$0xff] %vm273, %v250
  %508 = vst.msk [vmem:[%s3 + $0x750] sm:$0xff] %vm273, %v251
  %509 = vst.msk [vmem:[%s3 + $0x758] sm:$0xff] %vm273, %v252
  %510 = vst.msk [vmem:[%s3 + $0x760] sm:$0xff] %vm273, %v253
  %511 = vst.msk [vmem:[%s3 + $0x768] sm:$0xff] %vm273, %v254
  %512 = vst.msk [vmem:[%s3 + $0x770] sm:$0xff] %vm273, %v255
  %513 = vst.msk [vmem:[%s3 + $0x778] sm:$0xff] %vm273, %v256
  %514 = vst.msk [vmem:[%s3 + $0x780] sm:$0xff] %vm273, %v257
  %515 = vst.msk [vmem:[%s3 + $0x788] sm:$0xff] %vm273, %v258
  %516 = vst.msk [vmem:[%s3 + $0x790] sm:$0xff] %vm273, %v259
  %517 = vst.msk [vmem:[%s3 + $0x798] sm:$0xff] %vm273, %v260
  %518 = vst.msk [vmem:[%s3 + $0x7a0] sm:$0xff] %vm273, %v261
  %519 = vst.msk [vmem:[%s3 + $0x7a8] sm:$0xff] %vm273, %v262
  %520 = vst.msk [vmem:[%s3 + $0x7b0] sm:$0xff] %vm273, %v263
  %521 = vst.msk [vmem:[%s3 + $0x7b8] sm:$0xff] %vm273, %v264
  %522 = vst.msk [vmem:[%s3 + $0x7c0] sm:$0xff] %vm273, %v265
  %523 = vst.msk [vmem:[%s3 + $0x7c8] sm:$0xff] %vm273, %v266
  %524 = vst.msk [vmem:[%s3 + $0x7d0] sm:$0xff] %vm273, %v267
  %525 = vst.msk [vmem:[%s3 + $0x7d8] sm:$0xff] %vm273, %v268
  %526 = vst.msk [vmem:[%s3 + $0x7e0] sm:$0xff] %vm273, %v269
  %527 = vst.msk [vmem:[%s3 + $0x7e8] sm:$0xff] %vm273, %v270
  %528 = vst.msk [vmem:[%s3 + $0x7f0] sm:$0xff] %vm273, %v271
  %529 = vst.msk [vmem:[%s3 + $0x7f8] sm:$0xff] %vm273, %v272
  %v530 = vld [vmem:[%s1] sm:$0xff]
  %v531 = vld [vmem:[%s1 + $0x8] sm:$0xff]
  %v532 = vld [vmem:[%s1 + $0x10] sm:$0xff]
  %v533 = vld [vmem:[%s1 + $0x18] sm:$0xff]
  %v534 = vld [vmem:[%s1 + $0x20] sm:$0xff]
  %v535 = vld [vmem:[%s1 + $0x28] sm:$0xff]
  %v536 = vld [vmem:[%s1 + $0x30] sm:$0xff]
  %v537 = vld [vmem:[%s1 + $0x38] sm:$0xff]
  %v538 = vld [vmem:[%s1 + $0x40] sm:$0xff]
  %v539 = vld [vmem:[%s1 + $0x48] sm:$0xff]
  %v540 = vld [vmem:[%s1 + $0x50] sm:$0xff]
  %v541 = vld [vmem:[%s1 + $0x58] sm:$0xff]
  %v542 = vld [vmem:[%s1 + $0x60] sm:$0xff]
  %v543 = vld [vmem:[%s1 + $0x68] sm:$0xff]
  %v544 = vld [vmem:[%s1 + $0x70] sm:$0xff]
  %v545 = vld [vmem:[%s1 + $0x78] sm:$0xff]
  %v546 = vld [vmem:[%s1 + $0x80] sm:$0xff]
  %v547 = vld [vmem:[%s1 + $0x88] sm:$0xff]
  %v548 = vld [vmem:[%s1 + $0x90] sm:$0xff]
  %v549 = vld [vmem:[%s1 + $0x98] sm:$0xff]
  %v550 = vld [vmem:[%s1 + $0xa0] sm:$0xff]
  %v551 = vld [vmem:[%s1 + $0xa8] sm:$0xff]
  %v552 = vld [vmem:[%s1 + $0xb0] sm:$0xff]
  %v553 = vld [vmem:[%s1 + $0xb8] sm:$0xff]
  %v554 = vld [vmem:[%s1 + $0xc0] sm:$0xff]
  %v555 = vld [vmem:[%s1 + $0xc8] sm:$0xff]
  %v556 = vld [vmem:[%s1 + $0xd0] sm:$0xff]
  %v557 = vld [vmem:[%s1 + $0xd8] sm:$0xff]
  %v558 = vld [vmem:[%s1 + $0xe0] sm:$0xff]
  %v559 = vld [vmem:[%s1 + $0xe8] sm:$0xff]
  %v560 = vld [vmem:[%s1 + $0xf0] sm:$0xff]
  %v561 = vld [vmem:[%s1 + $0xf8] sm:$0xff]
  %v562 = vld [vmem:[%s1 + $0x100] sm:$0xff]
  %v563 = vld [vmem:[%s1 + $0x108] sm:$0xff]
  %v564 = vld [vmem:[%s1 + $0x110] sm:$0xff]
  %v565 = vld [vmem:[%s1 + $0x118] sm:$0xff]
  %v566 = vld [vmem:[%s1 + $0x120] sm:$0xff]
  %v567 = vld [vmem:[%s1 + $0x128] sm:$0xff]
  %v568 = vld [vmem:[%s1 + $0x130] sm:$0xff]
  %v569 = vld [vmem:[%s1 + $0x138] sm:$0xff]
  %v570 = vld [vmem:[%s1 + $0x140] sm:$0xff]
  %v571 = vld [vmem:[%s1 + $0x148] sm:$0xff]
  %v572 = vld [vmem:[%s1 + $0x150] sm:$0xff]
  %v573 = vld [vmem:[%s1 + $0x158] sm:$0xff]
  %v574 = vld [vmem:[%s1 + $0x160] sm:$0xff]
  %v575 = vld [vmem:[%s1 + $0x168] sm:$0xff]
  %v576 = vld [vmem:[%s1 + $0x170] sm:$0xff]
  %v577 = vld [vmem:[%s1 + $0x178] sm:$0xff]
  %v578 = vld [vmem:[%s1 + $0x180] sm:$0xff]
  %v579 = vld [vmem:[%s1 + $0x188] sm:$0xff]
  %v580 = vld [vmem:[%s1 + $0x190] sm:$0xff]
  %v581 = vld [vmem:[%s1 + $0x198] sm:$0xff]
  %v582 = vld [vmem:[%s1 + $0x1a0] sm:$0xff]
  %v583 = vld [vmem:[%s1 + $0x1a8] sm:$0xff]
  %v584 = vld [vmem:[%s1 + $0x1b0] sm:$0xff]
  %v585 = vld [vmem:[%s1 + $0x1b8] sm:$0xff]
  %v586 = vld [vmem:[%s1 + $0x1c0] sm:$0xff]
  %v587 = vld [vmem:[%s1 + $0x1c8] sm:$0xff]
  %v588 = vld [vmem:[%s1 + $0x1d0] sm:$0xff]
  %v589 = vld [vmem:[%s1 + $0x1d8] sm:$0xff]
  %v590 = vld [vmem:[%s1 + $0x1e0] sm:$0xff]
  %v591 = vld [vmem:[%s1 + $0x1e8] sm:$0xff]
  %v592 = vld [vmem:[%s1 + $0x1f0] sm:$0xff]
  %v593 = vld [vmem:[%s1 + $0x1f8] sm:$0xff]
  %v594 = vld [vmem:[%s1 + $0x200] sm:$0xff]
  %v595 = vld [vmem:[%s1 + $0x208] sm:$0xff]
  %v596 = vld [vmem:[%s1 + $0x210] sm:$0xff]
  %v597 = vld [vmem:[%s1 + $0x218] sm:$0xff]
  %v598 = vld [vmem:[%s1 + $0x220] sm:$0xff]
  %v599 = vld [vmem:[%s1 + $0x228] sm:$0xff]
  %v600 = vld [vmem:[%s1 + $0x230] sm:$0xff]
  %v601 = vld [vmem:[%s1 + $0x238] sm:$0xff]
  %v602 = vld [vmem:[%s1 + $0x240] sm:$0xff]
  %v603 = vld [vmem:[%s1 + $0x248] sm:$0xff]
  %v604 = vld [vmem:[%s1 + $0x250] sm:$0xff]
  %v605 = vld [vmem:[%s1 + $0x258] sm:$0xff]
  %v606 = vld [vmem:[%s1 + $0x260] sm:$0xff]
  %v607 = vld [vmem:[%s1 + $0x268] sm:$0xff]
  %v608 = vld [vmem:[%s1 + $0x270] sm:$0xff]
  %v609 = vld [vmem:[%s1 + $0x278] sm:$0xff]
  %v610 = vld [vmem:[%s1 + $0x280] sm:$0xff]
  %v611 = vld [vmem:[%s1 + $0x288] sm:$0xff]
  %v612 = vld [vmem:[%s1 + $0x290] sm:$0xff]
  %v613 = vld [vmem:[%s1 + $0x298] sm:$0xff]
  %v614 = vld [vmem:[%s1 + $0x2a0] sm:$0xff]
  %v615 = vld [vmem:[%s1 + $0x2a8] sm:$0xff]
  %v616 = vld [vmem:[%s1 + $0x2b0] sm:$0xff]
  %v617 = vld [vmem:[%s1 + $0x2b8] sm:$0xff]
  %v618 = vld [vmem:[%s1 + $0x2c0] sm:$0xff]
  %v619 = vld [vmem:[%s1 + $0x2c8] sm:$0xff]
  %v620 = vld [vmem:[%s1 + $0x2d0] sm:$0xff]
  %v621 = vld [vmem:[%s1 + $0x2d8] sm:$0xff]
  %v622 = vld [vmem:[%s1 + $0x2e0] sm:$0xff]
  %v623 = vld [vmem:[%s1 + $0x2e8] sm:$0xff]
  %v624 = vld [vmem:[%s1 + $0x2f0] sm:$0xff]
  %v625 = vld [vmem:[%s1 + $0x2f8] sm:$0xff]
  %v626 = vld [vmem:[%s1 + $0x300] sm:$0xff]
  %v627 = vld [vmem:[%s1 + $0x308] sm:$0xff]
  %v628 = vld [vmem:[%s1 + $0x310] sm:$0xff]
  %v629 = vld [vmem:[%s1 + $0x318] sm:$0xff]
  %v630 = vld [vmem:[%s1 + $0x320] sm:$0xff]
  %v631 = vld [vmem:[%s1 + $0x328] sm:$0xff]
  %v632 = vld [vmem:[%s1 + $0x330] sm:$0xff]
  %v633 = vld [vmem:[%s1 + $0x338] sm:$0xff]
  %v634 = vld [vmem:[%s1 + $0x340] sm:$0xff]
  %v635 = vld [vmem:[%s1 + $0x348] sm:$0xff]
  %v636 = vld [vmem:[%s1 + $0x350] sm:$0xff]
  %v637 = vld [vmem:[%s1 + $0x358] sm:$0xff]
  %v638 = vld [vmem:[%s1 + $0x360] sm:$0xff]
  %v639 = vld [vmem:[%s1 + $0x368] sm:$0xff]
  %v640 = vld [vmem:[%s1 + $0x370] sm:$0xff]
  %v641 = vld [vmem:[%s1 + $0x378] sm:$0xff]
  %v642 = vld [vmem:[%s1 + $0x380] sm:$0xff]
  %v643 = vld [vmem:[%s1 + $0x388] sm:$0xff]
  %v644 = vld [vmem:[%s1 + $0x390] sm:$0xff]
  %v645 = vld [vmem:[%s1 + $0x398] sm:$0xff]
  %v646 = vld [vmem:[%s1 + $0x3a0] sm:$0xff]
  %v647 = vld [vmem:[%s1 + $0x3a8] sm:$0xff]
  %v648 = vld [vmem:[%s1 + $0x3b0] sm:$0xff]
  %v649 = vld [vmem:[%s1 + $0x3b8] sm:$0xff]
  %v650 = vld [vmem:[%s1 + $0x3c0] sm:$0xff]
  %v651 = vld [vmem:[%s1 + $0x3c8] sm:$0xff]
  %v652 = vld [vmem:[%s1 + $0x3d0] sm:$0xff]
  %v653 = vld [vmem:[%s1 + $0x3d8] sm:$0xff]
  %v654 = vld [vmem:[%s1 + $0x3e0] sm:$0xff]
  %v655 = vld [vmem:[%s1 + $0x3e8] sm:$0xff]
  %v656 = vld [vmem:[%s1 + $0x3f0] sm:$0xff]
  %v657 = vld [vmem:[%s1 + $0x3f8] sm:$0xff]
  %v658 = vld [vmem:[%s1 + $0x400] sm:$0xff]
  %v659 = vld [vmem:[%s1 + $0x408] sm:$0xff]
  %v660 = vld [vmem:[%s1 + $0x410] sm:$0xff]
  %v661 = vld [vmem:[%s1 + $0x418] sm:$0xff]
  %v662 = vld [vmem:[%s1 + $0x420] sm:$0xff]
  %v663 = vld [vmem:[%s1 + $0x428] sm:$0xff]
  %v664 = vld [vmem:[%s1 + $0x430] sm:$0xff]
  %v665 = vld [vmem:[%s1 + $0x438] sm:$0xff]
  %v666 = vld [vmem:[%s1 + $0x440] sm:$0xff]
  %v667 = vld [vmem:[%s1 + $0x448] sm:$0xff]
  %v668 = vld [vmem:[%s1 + $0x450] sm:$0xff]
  %v669 = vld [vmem:[%s1 + $0x458] sm:$0xff]
  %v670 = vld [vmem:[%s1 + $0x460] sm:$0xff]
  %v671 = vld [vmem:[%s1 + $0x468] sm:$0xff]
  %v672 = vld [vmem:[%s1 + $0x470] sm:$0xff]
  %v673 = vld [vmem:[%s1 + $0x478] sm:$0xff]
  %v674 = vld [vmem:[%s1 + $0x480] sm:$0xff]
  %v675 = vld [vmem:[%s1 + $0x488] sm:$0xff]
  %v676 = vld [vmem:[%s1 + $0x490] sm:$0xff]
  %v677 = vld [vmem:[%s1 + $0x498] sm:$0xff]
  %v678 = vld [vmem:[%s1 + $0x4a0] sm:$0xff]
  %v679 = vld [vmem:[%s1 + $0x4a8] sm:$0xff]
  %v680 = vld [vmem:[%s1 + $0x4b0] sm:$0xff]
  %v681 = vld [vmem:[%s1 + $0x4b8] sm:$0xff]
  %v682 = vld [vmem:[%s1 + $0x4c0] sm:$0xff]
  %v683 = vld [vmem:[%s1 + $0x4c8] sm:$0xff]
  %v684 = vld [vmem:[%s1 + $0x4d0] sm:$0xff]
  %v685 = vld [vmem:[%s1 + $0x4d8] sm:$0xff]
  %v686 = vld [vmem:[%s1 + $0x4e0] sm:$0xff]
  %v687 = vld [vmem:[%s1 + $0x4e8] sm:$0xff]
  %v688 = vld [vmem:[%s1 + $0x4f0] sm:$0xff]
  %v689 = vld [vmem:[%s1 + $0x4f8] sm:$0xff]
  %v690 = vld [vmem:[%s1 + $0x500] sm:$0xff]
  %v691 = vld [vmem:[%s1 + $0x508] sm:$0xff]
  %v692 = vld [vmem:[%s1 + $0x510] sm:$0xff]
  %v693 = vld [vmem:[%s1 + $0x518] sm:$0xff]
  %v694 = vld [vmem:[%s1 + $0x520] sm:$0xff]
  %v695 = vld [vmem:[%s1 + $0x528] sm:$0xff]
  %v696 = vld [vmem:[%s1 + $0x530] sm:$0xff]
  %v697 = vld [vmem:[%s1 + $0x538] sm:$0xff]
  %v698 = vld [vmem:[%s1 + $0x540] sm:$0xff]
  %v699 = vld [vmem:[%s1 + $0x548] sm:$0xff]
  %v700 = vld [vmem:[%s1 + $0x550] sm:$0xff]
  %v701 = vld [vmem:[%s1 + $0x558] sm:$0xff]
  %v702 = vld [vmem:[%s1 + $0x560] sm:$0xff]
  %v703 = vld [vmem:[%s1 + $0x568] sm:$0xff]
  %v704 = vld [vmem:[%s1 + $0x570] sm:$0xff]
  %v705 = vld [vmem:[%s1 + $0x578] sm:$0xff]
  %v706 = vld [vmem:[%s1 + $0x580] sm:$0xff]
  %v707 = vld [vmem:[%s1 + $0x588] sm:$0xff]
  %v708 = vld [vmem:[%s1 + $0x590] sm:$0xff]
  %v709 = vld [vmem:[%s1 + $0x598] sm:$0xff]
  %v710 = vld [vmem:[%s1 + $0x5a0] sm:$0xff]
  %v711 = vld [vmem:[%s1 + $0x5a8] sm:$0xff]
  %v712 = vld [vmem:[%s1 + $0x5b0] sm:$0xff]
  %v713 = vld [vmem:[%s1 + $0x5b8] sm:$0xff]
  %v714 = vld [vmem:[%s1 + $0x5c0] sm:$0xff]
  %v715 = vld [vmem:[%s1 + $0x5c8] sm:$0xff]
  %v716 = vld [vmem:[%s1 + $0x5d0] sm:$0xff]
  %v717 = vld [vmem:[%s1 + $0x5d8] sm:$0xff]
  %v718 = vld [vmem:[%s1 + $0x5e0] sm:$0xff]
  %v719 = vld [vmem:[%s1 + $0x5e8] sm:$0xff]
  %v720 = vld [vmem:[%s1 + $0x5f0] sm:$0xff]
  %v721 = vld [vmem:[%s1 + $0x5f8] sm:$0xff]
  %v722 = vld [vmem:[%s1 + $0x600] sm:$0xff]
  %v723 = vld [vmem:[%s1 + $0x608] sm:$0xff]
  %v724 = vld [vmem:[%s1 + $0x610] sm:$0xff]
  %v725 = vld [vmem:[%s1 + $0x618] sm:$0xff]
  %v726 = vld [vmem:[%s1 + $0x620] sm:$0xff]
  %v727 = vld [vmem:[%s1 + $0x628] sm:$0xff]
  %v728 = vld [vmem:[%s1 + $0x630] sm:$0xff]
  %v729 = vld [vmem:[%s1 + $0x638] sm:$0xff]
  %v730 = vld [vmem:[%s1 + $0x640] sm:$0xff]
  %v731 = vld [vmem:[%s1 + $0x648] sm:$0xff]
  %v732 = vld [vmem:[%s1 + $0x650] sm:$0xff]
  %v733 = vld [vmem:[%s1 + $0x658] sm:$0xff]
  %v734 = vld [vmem:[%s1 + $0x660] sm:$0xff]
  %v735 = vld [vmem:[%s1 + $0x668] sm:$0xff]
  %v736 = vld [vmem:[%s1 + $0x670] sm:$0xff]
  %v737 = vld [vmem:[%s1 + $0x678] sm:$0xff]
  %v738 = vld [vmem:[%s1 + $0x680] sm:$0xff]
  %v739 = vld [vmem:[%s1 + $0x688] sm:$0xff]
  %v740 = vld [vmem:[%s1 + $0x690] sm:$0xff]
  %v741 = vld [vmem:[%s1 + $0x698] sm:$0xff]
  %v742 = vld [vmem:[%s1 + $0x6a0] sm:$0xff]
  %v743 = vld [vmem:[%s1 + $0x6a8] sm:$0xff]
  %v744 = vld [vmem:[%s1 + $0x6b0] sm:$0xff]
  %v745 = vld [vmem:[%s1 + $0x6b8] sm:$0xff]
  %v746 = vld [vmem:[%s1 + $0x6c0] sm:$0xff]
  %v747 = vld [vmem:[%s1 + $0x6c8] sm:$0xff]
  %v748 = vld [vmem:[%s1 + $0x6d0] sm:$0xff]
  %v749 = vld [vmem:[%s1 + $0x6d8] sm:$0xff]
  %v750 = vld [vmem:[%s1 + $0x6e0] sm:$0xff]
  %v751 = vld [vmem:[%s1 + $0x6e8] sm:$0xff]
  %v752 = vld [vmem:[%s1 + $0x6f0] sm:$0xff]
  %v753 = vld [vmem:[%s1 + $0x6f8] sm:$0xff]
  %v754 = vld [vmem:[%s1 + $0x700] sm:$0xff]
  %v755 = vld [vmem:[%s1 + $0x708] sm:$0xff]
  %v756 = vld [vmem:[%s1 + $0x710] sm:$0xff]
  %v757 = vld [vmem:[%s1 + $0x718] sm:$0xff]
  %v758 = vld [vmem:[%s1 + $0x720] sm:$0xff]
  %v759 = vld [vmem:[%s1 + $0x728] sm:$0xff]
  %v760 = vld [vmem:[%s1 + $0x730] sm:$0xff]
  %v761 = vld [vmem:[%s1 + $0x738] sm:$0xff]
  %v762 = vld [vmem:[%s1 + $0x740] sm:$0xff]
  %v763 = vld [vmem:[%s1 + $0x748] sm:$0xff]
  %v764 = vld [vmem:[%s1 + $0x750] sm:$0xff]
  %v765 = vld [vmem:[%s1 + $0x758] sm:$0xff]
  %v766 = vld [vmem:[%s1 + $0x760] sm:$0xff]
  %v767 = vld [vmem:[%s1 + $0x768] sm:$0xff]
  %v768 = vld [vmem:[%s1 + $0x770] sm:$0xff]
  %v769 = vld [vmem:[%s1 + $0x778] sm:$0xff]
  %v770 = vld [vmem:[%s1 + $0x780] sm:$0xff]
  %v771 = vld [vmem:[%s1 + $0x788] sm:$0xff]
  %v772 = vld [vmem:[%s1 + $0x790] sm:$0xff]
  %v773 = vld [vmem:[%s1 + $0x798] sm:$0xff]
  %v774 = vld [vmem:[%s1 + $0x7a0] sm:$0xff]
  %v775 = vld [vmem:[%s1 + $0x7a8] sm:$0xff]
  %v776 = vld [vmem:[%s1 + $0x7b0] sm:$0xff]
  %v777 = vld [vmem:[%s1 + $0x7b8] sm:$0xff]
  %v778 = vld [vmem:[%s1 + $0x7c0] sm:$0xff]
  %v779 = vld [vmem:[%s1 + $0x7c8] sm:$0xff]
  %v780 = vld [vmem:[%s1 + $0x7d0] sm:$0xff]
  %v781 = vld [vmem:[%s1 + $0x7d8] sm:$0xff]
  %v782 = vld [vmem:[%s1 + $0x7e0] sm:$0xff]
  %v783 = vld [vmem:[%s1 + $0x7e8] sm:$0xff]
  %v784 = vld [vmem:[%s1 + $0x7f0] sm:$0xff]
  %v785 = vld [vmem:[%s1 + $0x7f8] sm:$0xff]
  %vm786 = vcmask 89088
  %787 = vst.msk [vmem:[%s4] sm:$0xff] %vm786, %v530
  %788 = vst.msk [vmem:[%s4 + $0x8] sm:$0xff] %vm786, %v531
  %789 = vst.msk [vmem:[%s4 + $0x10] sm:$0xff] %vm786, %v532
  %790 = vst.msk [vmem:[%s4 + $0x18] sm:$0xff] %vm786, %v533
  %791 = vst.msk [vmem:[%s4 + $0x20] sm:$0xff] %vm786, %v534
  %792 = vst.msk [vmem:[%s4 + $0x28] sm:$0xff] %vm786, %v535
  %793 = vst.msk [vmem:[%s4 + $0x30] sm:$0xff] %vm786, %v536
  %794 = vst.msk [vmem:[%s4 + $0x38] sm:$0xff] %vm786, %v537
  %795 = vst.msk [vmem:[%s4 + $0x40] sm:$0xff] %vm786, %v538
  %796 = vst.msk [vmem:[%s4 + $0x48] sm:$0xff] %vm786, %v539
  %797 = vst.msk [vmem:[%s4 + $0x50] sm:$0xff] %vm786, %v540
  %798 = vst.msk [vmem:[%s4 + $0x58] sm:$0xff] %vm786, %v541
  %799 = vst.msk [vmem:[%s4 + $0x60] sm:$0xff] %vm786, %v542
  %800 = vst.msk [vmem:[%s4 + $0x68] sm:$0xff] %vm786, %v543
  %801 = vst.msk [vmem:[%s4 + $0x70] sm:$0xff] %vm786, %v544
  %802 = vst.msk [vmem:[%s4 + $0x78] sm:$0xff] %vm786, %v545
  %803 = vst.msk [vmem:[%s4 + $0x80] sm:$0xff] %vm786, %v546
  %804 = vst.msk [vmem:[%s4 + $0x88] sm:$0xff] %vm786, %v547
  %805 = vst.msk [vmem:[%s4 + $0x90] sm:$0xff] %vm786, %v548
  %806 = vst.msk [vmem:[%s4 + $0x98] sm:$0xff] %vm786, %v549
  %807 = vst.msk [vmem:[%s4 + $0xa0] sm:$0xff] %vm786, %v550
  %808 = vst.msk [vmem:[%s4 + $0xa8] sm:$0xff] %vm786, %v551
  %809 = vst.msk [vmem:[%s4 + $0xb0] sm:$0xff] %vm786, %v552
  %810 = vst.msk [vmem:[%s4 + $0xb8] sm:$0xff] %vm786, %v553
  %811 = vst.msk [vmem:[%s4 + $0xc0] sm:$0xff] %vm786, %v554
  %812 = vst.msk [vmem:[%s4 + $0xc8] sm:$0xff] %vm786, %v555
  %813 = vst.msk [vmem:[%s4 + $0xd0] sm:$0xff] %vm786, %v556
  %814 = vst.msk [vmem:[%s4 + $0xd8] sm:$0xff] %vm786, %v557
  %815 = vst.msk [vmem:[%s4 + $0xe0] sm:$0xff] %vm786, %v558
  %816 = vst.msk [vmem:[%s4 + $0xe8] sm:$0xff] %vm786, %v559
  %817 = vst.msk [vmem:[%s4 + $0xf0] sm:$0xff] %vm786, %v560
  %818 = vst.msk [vmem:[%s4 + $0xf8] sm:$0xff] %vm786, %v561
  %819 = vst.msk [vmem:[%s4 + $0x100] sm:$0xff] %vm786, %v562
  %820 = vst.msk [vmem:[%s4 + $0x108] sm:$0xff] %vm786, %v563
  %821 = vst.msk [vmem:[%s4 + $0x110] sm:$0xff] %vm786, %v564
  %822 = vst.msk [vmem:[%s4 + $0x118] sm:$0xff] %vm786, %v565
  %823 = vst.msk [vmem:[%s4 + $0x120] sm:$0xff] %vm786, %v566
  %824 = vst.msk [vmem:[%s4 + $0x128] sm:$0xff] %vm786, %v567
  %825 = vst.msk [vmem:[%s4 + $0x130] sm:$0xff] %vm786, %v568
  %826 = vst.msk [vmem:[%s4 + $0x138] sm:$0xff] %vm786, %v569
  %827 = vst.msk [vmem:[%s4 + $0x140] sm:$0xff] %vm786, %v570
  %828 = vst.msk [vmem:[%s4 + $0x148] sm:$0xff] %vm786, %v571
  %829 = vst.msk [vmem:[%s4 + $0x150] sm:$0xff] %vm786, %v572
  %830 = vst.msk [vmem:[%s4 + $0x158] sm:$0xff] %vm786, %v573
  %831 = vst.msk [vmem:[%s4 + $0x160] sm:$0xff] %vm786, %v574
  %832 = vst.msk [vmem:[%s4 + $0x168] sm:$0xff] %vm786, %v575
  %833 = vst.msk [vmem:[%s4 + $0x170] sm:$0xff] %vm786, %v576
  %834 = vst.msk [vmem:[%s4 + $0x178] sm:$0xff] %vm786, %v577
  %835 = vst.msk [vmem:[%s4 + $0x180] sm:$0xff] %vm786, %v578
  %836 = vst.msk [vmem:[%s4 + $0x188] sm:$0xff] %vm786, %v579
  %837 = vst.msk [vmem:[%s4 + $0x190] sm:$0xff] %vm786, %v580
  %838 = vst.msk [vmem:[%s4 + $0x198] sm:$0xff] %vm786, %v581
  %839 = vst.msk [vmem:[%s4 + $0x1a0] sm:$0xff] %vm786, %v582
  %840 = vst.msk [vmem:[%s4 + $0x1a8] sm:$0xff] %vm786, %v583
  %841 = vst.msk [vmem:[%s4 + $0x1b0] sm:$0xff] %vm786, %v584
  %842 = vst.msk [vmem:[%s4 + $0x1b8] sm:$0xff] %vm786, %v585
  %843 = vst.msk [vmem:[%s4 + $0x1c0] sm:$0xff] %vm786, %v586
  %844 = vst.msk [vmem:[%s4 + $0x1c8] sm:$0xff] %vm786, %v587
  %845 = vst.msk [vmem:[%s4 + $0x1d0] sm:$0xff] %vm786, %v588
  %846 = vst.msk [vmem:[%s4 + $0x1d8] sm:$0xff] %vm786, %v589
  %847 = vst.msk [vmem:[%s4 + $0x1e0] sm:$0xff] %vm786, %v590
  %848 = vst.msk [vmem:[%s4 + $0x1e8] sm:$0xff] %vm786, %v591
  %849 = vst.msk [vmem:[%s4 + $0x1f0] sm:$0xff] %vm786, %v592
  %850 = vst.msk [vmem:[%s4 + $0x1f8] sm:$0xff] %vm786, %v593
  %851 = vst.msk [vmem:[%s4 + $0x200] sm:$0xff] %vm786, %v594
  %852 = vst.msk [vmem:[%s4 + $0x208] sm:$0xff] %vm786, %v595
  %853 = vst.msk [vmem:[%s4 + $0x210] sm:$0xff] %vm786, %v596
  %854 = vst.msk [vmem:[%s4 + $0x218] sm:$0xff] %vm786, %v597
  %855 = vst.msk [vmem:[%s4 + $0x220] sm:$0xff] %vm786, %v598
  %856 = vst.msk [vmem:[%s4 + $0x228] sm:$0xff] %vm786, %v599
  %857 = vst.msk [vmem:[%s4 + $0x230] sm:$0xff] %vm786, %v600
  %858 = vst.msk [vmem:[%s4 + $0x238] sm:$0xff] %vm786, %v601
  %859 = vst.msk [vmem:[%s4 + $0x240] sm:$0xff] %vm786, %v602
  %860 = vst.msk [vmem:[%s4 + $0x248] sm:$0xff] %vm786, %v603
  %861 = vst.msk [vmem:[%s4 + $0x250] sm:$0xff] %vm786, %v604
  %862 = vst.msk [vmem:[%s4 + $0x258] sm:$0xff] %vm786, %v605
  %863 = vst.msk [vmem:[%s4 + $0x260] sm:$0xff] %vm786, %v606
  %864 = vst.msk [vmem:[%s4 + $0x268] sm:$0xff] %vm786, %v607
  %865 = vst.msk [vmem:[%s4 + $0x270] sm:$0xff] %vm786, %v608
  %866 = vst.msk [vmem:[%s4 + $0x278] sm:$0xff] %vm786, %v609
  %867 = vst.msk [vmem:[%s4 + $0x280] sm:$0xff] %vm786, %v610
  %868 = vst.msk [vmem:[%s4 + $0x288] sm:$0xff] %vm786, %v611
  %869 = vst.msk [vmem:[%s4 + $0x290] sm:$0xff] %vm786, %v612
  %870 = vst.msk [vmem:[%s4 + $0x298] sm:$0xff] %vm786, %v613
  %871 = vst.msk [vmem:[%s4 + $0x2a0] sm:$0xff] %vm786, %v614
  %872 = vst.msk [vmem:[%s4 + $0x2a8] sm:$0xff] %vm786, %v615
  %873 = vst.msk [vmem:[%s4 + $0x2b0] sm:$0xff] %vm786, %v616
  %874 = vst.msk [vmem:[%s4 + $0x2b8] sm:$0xff] %vm786, %v617
  %875 = vst.msk [vmem:[%s4 + $0x2c0] sm:$0xff] %vm786, %v618
  %876 = vst.msk [vmem:[%s4 + $0x2c8] sm:$0xff] %vm786, %v619
  %877 = vst.msk [vmem:[%s4 + $0x2d0] sm:$0xff] %vm786, %v620
  %878 = vst.msk [vmem:[%s4 + $0x2d8] sm:$0xff] %vm786, %v621
  %879 = vst.msk [vmem:[%s4 + $0x2e0] sm:$0xff] %vm786, %v622
  %880 = vst.msk [vmem:[%s4 + $0x2e8] sm:$0xff] %vm786, %v623
  %881 = vst.msk [vmem:[%s4 + $0x2f0] sm:$0xff] %vm786, %v624
  %882 = vst.msk [vmem:[%s4 + $0x2f8] sm:$0xff] %vm786, %v625
  %883 = vst.msk [vmem:[%s4 + $0x300] sm:$0xff] %vm786, %v626
  %884 = vst.msk [vmem:[%s4 + $0x308] sm:$0xff] %vm786, %v627
  %885 = vst.msk [vmem:[%s4 + $0x310] sm:$0xff] %vm786, %v628
  %886 = vst.msk [vmem:[%s4 + $0x318] sm:$0xff] %vm786, %v629
  %887 = vst.msk [vmem:[%s4 + $0x320] sm:$0xff] %vm786, %v630
  %888 = vst.msk [vmem:[%s4 + $0x328] sm:$0xff] %vm786, %v631
  %889 = vst.msk [vmem:[%s4 + $0x330] sm:$0xff] %vm786, %v632
  %890 = vst.msk [vmem:[%s4 + $0x338] sm:$0xff] %vm786, %v633
  %891 = vst.msk [vmem:[%s4 + $0x340] sm:$0xff] %vm786, %v634
  %892 = vst.msk [vmem:[%s4 + $0x348] sm:$0xff] %vm786, %v635
  %893 = vst.msk [vmem:[%s4 + $0x350] sm:$0xff] %vm786, %v636
  %894 = vst.msk [vmem:[%s4 + $0x358] sm:$0xff] %vm786, %v637
  %895 = vst.msk [vmem:[%s4 + $0x360] sm:$0xff] %vm786, %v638
  %896 = vst.msk [vmem:[%s4 + $0x368] sm:$0xff] %vm786, %v639
  %897 = vst.msk [vmem:[%s4 + $0x370] sm:$0xff] %vm786, %v640
  %898 = vst.msk [vmem:[%s4 + $0x378] sm:$0xff] %vm786, %v641
  %899 = vst.msk [vmem:[%s4 + $0x380] sm:$0xff] %vm786, %v642
  %900 = vst.msk [vmem:[%s4 + $0x388] sm:$0xff] %vm786, %v643
  %901 = vst.msk [vmem:[%s4 + $0x390] sm:$0xff] %vm786, %v644
  %902 = vst.msk [vmem:[%s4 + $0x398] sm:$0xff] %vm786, %v645
  %903 = vst.msk [vmem:[%s4 + $0x3a0] sm:$0xff] %vm786, %v646
  %904 = vst.msk [vmem:[%s4 + $0x3a8] sm:$0xff] %vm786, %v647
  %905 = vst.msk [vmem:[%s4 + $0x3b0] sm:$0xff] %vm786, %v648
  %906 = vst.msk [vmem:[%s4 + $0x3b8] sm:$0xff] %vm786, %v649
  %907 = vst.msk [vmem:[%s4 + $0x3c0] sm:$0xff] %vm786, %v650
  %908 = vst.msk [vmem:[%s4 + $0x3c8] sm:$0xff] %vm786, %v651
  %909 = vst.msk [vmem:[%s4 + $0x3d0] sm:$0xff] %vm786, %v652
  %910 = vst.msk [vmem:[%s4 + $0x3d8] sm:$0xff] %vm786, %v653
  %911 = vst.msk [vmem:[%s4 + $0x3e0] sm:$0xff] %vm786, %v654
  %912 = vst.msk [vmem:[%s4 + $0x3e8] sm:$0xff] %vm786, %v655
  %913 = vst.msk [vmem:[%s4 + $0x3f0] sm:$0xff] %vm786, %v656
  %914 = vst.msk [vmem:[%s4 + $0x3f8] sm:$0xff] %vm786, %v657
  %915 = vst.msk [vmem:[%s4 + $0x400] sm:$0xff] %vm786, %v658
  %916 = vst.msk [vmem:[%s4 + $0x408] sm:$0xff] %vm786, %v659
  %917 = vst.msk [vmem:[%s4 + $0x410] sm:$0xff] %vm786, %v660
  %918 = vst.msk [vmem:[%s4 + $0x418] sm:$0xff] %vm786, %v661
  %919 = vst.msk [vmem:[%s4 + $0x420] sm:$0xff] %vm786, %v662
  %920 = vst.msk [vmem:[%s4 + $0x428] sm:$0xff] %vm786, %v663
  %921 = vst.msk [vmem:[%s4 + $0x430] sm:$0xff] %vm786, %v664
  %922 = vst.msk [vmem:[%s4 + $0x438] sm:$0xff] %vm786, %v665
  %923 = vst.msk [vmem:[%s4 + $0x440] sm:$0xff] %vm786, %v666
  %924 = vst.msk [vmem:[%s4 + $0x448] sm:$0xff] %vm786, %v667
  %925 = vst.msk [vmem:[%s4 + $0x450] sm:$0xff] %vm786, %v668
  %926 = vst.msk [vmem:[%s4 + $0x458] sm:$0xff] %vm786, %v669
  %927 = vst.msk [vmem:[%s4 + $0x460] sm:$0xff] %vm786, %v670
  %928 = vst.msk [vmem:[%s4 + $0x468] sm:$0xff] %vm786, %v671
  %929 = vst.msk [vmem:[%s4 + $0x470] sm:$0xff] %vm786, %v672
  %930 = vst.msk [vmem:[%s4 + $0x478] sm:$0xff] %vm786, %v673
  %931 = vst.msk [vmem:[%s4 + $0x480] sm:$0xff] %vm786, %v674
  %932 = vst.msk [vmem:[%s4 + $0x488] sm:$0xff] %vm786, %v675
  %933 = vst.msk [vmem:[%s4 + $0x490] sm:$0xff] %vm786, %v676
  %934 = vst.msk [vmem:[%s4 + $0x498] sm:$0xff] %vm786, %v677
  %935 = vst.msk [vmem:[%s4 + $0x4a0] sm:$0xff] %vm786, %v678
  %936 = vst.msk [vmem:[%s4 + $0x4a8] sm:$0xff] %vm786, %v679
  %937 = vst.msk [vmem:[%s4 + $0x4b0] sm:$0xff] %vm786, %v680
  %938 = vst.msk [vmem:[%s4 + $0x4b8] sm:$0xff] %vm786, %v681
  %939 = vst.msk [vmem:[%s4 + $0x4c0] sm:$0xff] %vm786, %v682
  %940 = vst.msk [vmem:[%s4 + $0x4c8] sm:$0xff] %vm786, %v683
  %941 = vst.msk [vmem:[%s4 + $0x4d0] sm:$0xff] %vm786, %v684
  %942 = vst.msk [vmem:[%s4 + $0x4d8] sm:$0xff] %vm786, %v685
  %943 = vst.msk [vmem:[%s4 + $0x4e0] sm:$0xff] %vm786, %v686
  %944 = vst.msk [vmem:[%s4 + $0x4e8] sm:$0xff] %vm786, %v687
  %945 = vst.msk [vmem:[%s4 + $0x4f0] sm:$0xff] %vm786, %v688
  %946 = vst.msk [vmem:[%s4 + $0x4f8] sm:$0xff] %vm786, %v689
  %947 = vst.msk [vmem:[%s4 + $0x500] sm:$0xff] %vm786, %v690
  %948 = vst.msk [vmem:[%s4 + $0x508] sm:$0xff] %vm786, %v691
  %949 = vst.msk [vmem:[%s4 + $0x510] sm:$0xff] %vm786, %v692
  %950 = vst.msk [vmem:[%s4 + $0x518] sm:$0xff] %vm786, %v693
  %951 = vst.msk [vmem:[%s4 + $0x520] sm:$0xff] %vm786, %v694
  %952 = vst.msk [vmem:[%s4 + $0x528] sm:$0xff] %vm786, %v695
  %953 = vst.msk [vmem:[%s4 + $0x530] sm:$0xff] %vm786, %v696
  %954 = vst.msk [vmem:[%s4 + $0x538] sm:$0xff] %vm786, %v697
  %955 = vst.msk [vmem:[%s4 + $0x540] sm:$0xff] %vm786, %v698
  %956 = vst.msk [vmem:[%s4 + $0x548] sm:$0xff] %vm786, %v699
  %957 = vst.msk [vmem:[%s4 + $0x550] sm:$0xff] %vm786, %v700
  %958 = vst.msk [vmem:[%s4 + $0x558] sm:$0xff] %vm786, %v701
  %959 = vst.msk [vmem:[%s4 + $0x560] sm:$0xff] %vm786, %v702
  %960 = vst.msk [vmem:[%s4 + $0x568] sm:$0xff] %vm786, %v703
  %961 = vst.msk [vmem:[%s4 + $0x570] sm:$0xff] %vm786, %v704
  %962 = vst.msk [vmem:[%s4 + $0x578] sm:$0xff] %vm786, %v705
  %963 = vst.msk [vmem:[%s4 + $0x580] sm:$0xff] %vm786, %v706
  %964 = vst.msk [vmem:[%s4 + $0x588] sm:$0xff] %vm786, %v707
  %965 = vst.msk [vmem:[%s4 + $0x590] sm:$0xff] %vm786, %v708
  %966 = vst.msk [vmem:[%s4 + $0x598] sm:$0xff] %vm786, %v709
  %967 = vst.msk [vmem:[%s4 + $0x5a0] sm:$0xff] %vm786, %v710
  %968 = vst.msk [vmem:[%s4 + $0x5a8] sm:$0xff] %vm786, %v711
  %969 = vst.msk [vmem:[%s4 + $0x5b0] sm:$0xff] %vm786, %v712
  %970 = vst.msk [vmem:[%s4 + $0x5b8] sm:$0xff] %vm786, %v713
  %971 = vst.msk [vmem:[%s4 + $0x5c0] sm:$0xff] %vm786, %v714
  %972 = vst.msk [vmem:[%s4 + $0x5c8] sm:$0xff] %vm786, %v715
  %973 = vst.msk [vmem:[%s4 + $0x5d0] sm:$0xff] %vm786, %v716
  %974 = vst.msk [vmem:[%s4 + $0x5d8] sm:$0xff] %vm786, %v717
  %975 = vst.msk [vmem:[%s4 + $0x5e0] sm:$0xff] %vm786, %v718
  %976 = vst.msk [vmem:[%s4 + $0x5e8] sm:$0xff] %vm786, %v719
  %977 = vst.msk [vmem:[%s4 + $0x5f0] sm:$0xff] %vm786, %v720
  %978 = vst.msk [vmem:[%s4 + $0x5f8] sm:$0xff] %vm786, %v721
  %979 = vst.msk [vmem:[%s4 + $0x600] sm:$0xff] %vm786, %v722
  %980 = vst.msk [vmem:[%s4 + $0x608] sm:$0xff] %vm786, %v723
  %981 = vst.msk [vmem:[%s4 + $0x610] sm:$0xff] %vm786, %v724
  %982 = vst.msk [vmem:[%s4 + $0x618] sm:$0xff] %vm786, %v725
  %983 = vst.msk [vmem:[%s4 + $0x620] sm:$0xff] %vm786, %v726
  %984 = vst.msk [vmem:[%s4 + $0x628] sm:$0xff] %vm786, %v727
  %985 = vst.msk [vmem:[%s4 + $0x630] sm:$0xff] %vm786, %v728
  %986 = vst.msk [vmem:[%s4 + $0x638] sm:$0xff] %vm786, %v729
  %987 = vst.msk [vmem:[%s4 + $0x640] sm:$0xff] %vm786, %v730
  %988 = vst.msk [vmem:[%s4 + $0x648] sm:$0xff] %vm786, %v731
  %989 = vst.msk [vmem:[%s4 + $0x650] sm:$0xff] %vm786, %v732
  %990 = vst.msk [vmem:[%s4 + $0x658] sm:$0xff] %vm786, %v733
  %991 = vst.msk [vmem:[%s4 + $0x660] sm:$0xff] %vm786, %v734
  %992 = vst.msk [vmem:[%s4 + $0x668] sm:$0xff] %vm786, %v735
  %993 = vst.msk [vmem:[%s4 + $0x670] sm:$0xff] %vm786, %v736
  %994 = vst.msk [vmem:[%s4 + $0x678] sm:$0xff] %vm786, %v737
  %995 = vst.msk [vmem:[%s4 + $0x680] sm:$0xff] %vm786, %v738
  %996 = vst.msk [vmem:[%s4 + $0x688] sm:$0xff] %vm786, %v739
  %997 = vst.msk [vmem:[%s4 + $0x690] sm:$0xff] %vm786, %v740
  %998 = vst.msk [vmem:[%s4 + $0x698] sm:$0xff] %vm786, %v741
  %999 = vst.msk [vmem:[%s4 + $0x6a0] sm:$0xff] %vm786, %v742
  %1000 = vst.msk [vmem:[%s4 + $0x6a8] sm:$0xff] %vm786, %v743
  %1001 = vst.msk [vmem:[%s4 + $0x6b0] sm:$0xff] %vm786, %v744
  %1002 = vst.msk [vmem:[%s4 + $0x6b8] sm:$0xff] %vm786, %v745
  %1003 = vst.msk [vmem:[%s4 + $0x6c0] sm:$0xff] %vm786, %v746
  %1004 = vst.msk [vmem:[%s4 + $0x6c8] sm:$0xff] %vm786, %v747
  %1005 = vst.msk [vmem:[%s4 + $0x6d0] sm:$0xff] %vm786, %v748
  %1006 = vst.msk [vmem:[%s4 + $0x6d8] sm:$0xff] %vm786, %v749
  %1007 = vst.msk [vmem:[%s4 + $0x6e0] sm:$0xff] %vm786, %v750
  %1008 = vst.msk [vmem:[%s4 + $0x6e8] sm:$0xff] %vm786, %v751
  %1009 = vst.msk [vmem:[%s4 + $0x6f0] sm:$0xff] %vm786, %v752
  %1010 = vst.msk [vmem:[%s4 + $0x6f8] sm:$0xff] %vm786, %v753
  %1011 = vst.msk [vmem:[%s4 + $0x700] sm:$0xff] %vm786, %v754
  %1012 = vst.msk [vmem:[%s4 + $0x708] sm:$0xff] %vm786, %v755
  %1013 = vst.msk [vmem:[%s4 + $0x710] sm:$0xff] %vm786, %v756
  %1014 = vst.msk [vmem:[%s4 + $0x718] sm:$0xff] %vm786, %v757
  %1015 = vst.msk [vmem:[%s4 + $0x720] sm:$0xff] %vm786, %v758
  %1016 = vst.msk [vmem:[%s4 + $0x728] sm:$0xff] %vm786, %v759
  %1017 = vst.msk [vmem:[%s4 + $0x730] sm:$0xff] %vm786, %v760
  %1018 = vst.msk [vmem:[%s4 + $0x738] sm:$0xff] %vm786, %v761
  %1019 = vst.msk [vmem:[%s4 + $0x740] sm:$0xff] %vm786, %v762
  %1020 = vst.msk [vmem:[%s4 + $0x748] sm:$0xff] %vm786, %v763
  %1021 = vst.msk [vmem:[%s4 + $0x750] sm:$0xff] %vm786, %v764
  %1022 = vst.msk [vmem:[%s4 + $0x758] sm:$0xff] %vm786, %v765
  %1023 = vst.msk [vmem:[%s4 + $0x760] sm:$0xff] %vm786, %v766
  %1024 = vst.msk [vmem:[%s4 + $0x768] sm:$0xff] %vm786, %v767
  %1025 = vst.msk [vmem:[%s4 + $0x770] sm:$0xff] %vm786, %v768
  %1026 = vst.msk [vmem:[%s4 + $0x778] sm:$0xff] %vm786, %v769
  %1027 = vst.msk [vmem:[%s4 + $0x780] sm:$0xff] %vm786, %v770
  %1028 = vst.msk [vmem:[%s4 + $0x788] sm:$0xff] %vm786, %v771
  %1029 = vst.msk [vmem:[%s4 + $0x790] sm:$0xff] %vm786, %v772
  %1030 = vst.msk [vmem:[%s4 + $0x798] sm:$0xff] %vm786, %v773
  %1031 = vst.msk [vmem:[%s4 + $0x7a0] sm:$0xff] %vm786, %v774
  %1032 = vst.msk [vmem:[%s4 + $0x7a8] sm:$0xff] %vm786, %v775
  %1033 = vst.msk [vmem:[%s4 + $0x7b0] sm:$0xff] %vm786, %v776
  %1034 = vst.msk [vmem:[%s4 + $0x7b8] sm:$0xff] %vm786, %v777
  %1035 = vst.msk [vmem:[%s4 + $0x7c0] sm:$0xff] %vm786, %v778
  %1036 = vst.msk [vmem:[%s4 + $0x7c8] sm:$0xff] %vm786, %v779
  %1037 = vst.msk [vmem:[%s4 + $0x7d0] sm:$0xff] %vm786, %v780
  %1038 = vst.msk [vmem:[%s4 + $0x7d8] sm:$0xff] %vm786, %v781
  %1039 = vst.msk [vmem:[%s4 + $0x7e0] sm:$0xff] %vm786, %v782
  %1040 = vst.msk [vmem:[%s4 + $0x7e8] sm:$0xff] %vm786, %v783
  %1041 = vst.msk [vmem:[%s4 + $0x7f0] sm:$0xff] %vm786, %v784
  %1042 = vst.msk [vmem:[%s4 + $0x7f8] sm:$0xff] %vm786, %v785
  %v1043 = vld [vmem:[%s2] sm:$0xff]
  %v1044 = vld [vmem:[%s2 + $0x8] sm:$0xff]
  %v1045 = vld [vmem:[%s2 + $0x10] sm:$0xff]
  %v1046 = vld [vmem:[%s2 + $0x18] sm:$0xff]
  %v1047 = vld [vmem:[%s2 + $0x20] sm:$0xff]
  %v1048 = vld [vmem:[%s2 + $0x28] sm:$0xff]
  %v1049 = vld [vmem:[%s2 + $0x30] sm:$0xff]
  %v1050 = vld [vmem:[%s2 + $0x38] sm:$0xff]
  %v1051 = vld [vmem:[%s2 + $0x40] sm:$0xff]
  %v1052 = vld [vmem:[%s2 + $0x48] sm:$0xff]
  %v1053 = vld [vmem:[%s2 + $0x50] sm:$0xff]
  %v1054 = vld [vmem:[%s2 + $0x58] sm:$0xff]
  %v1055 = vld [vmem:[%s2 + $0x60] sm:$0xff]
  %v1056 = vld [vmem:[%s2 + $0x68] sm:$0xff]
  %v1057 = vld [vmem:[%s2 + $0x70] sm:$0xff]
  %v1058 = vld [vmem:[%s2 + $0x78] sm:$0xff]
  %v1059 = vld [vmem:[%s2 + $0x80] sm:$0xff]
  %v1060 = vld [vmem:[%s2 + $0x88] sm:$0xff]
  %v1061 = vld [vmem:[%s2 + $0x90] sm:$0xff]
  %v1062 = vld [vmem:[%s2 + $0x98] sm:$0xff]
  %v1063 = vld [vmem:[%s2 + $0xa0] sm:$0xff]
  %v1064 = vld [vmem:[%s2 + $0xa8] sm:$0xff]
  %v1065 = vld [vmem:[%s2 + $0xb0] sm:$0xff]
  %v1066 = vld [vmem:[%s2 + $0xb8] sm:$0xff]
  %v1067 = vld [vmem:[%s2 + $0xc0] sm:$0xff]
  %v1068 = vld [vmem:[%s2 + $0xc8] sm:$0xff]
  %v1069 = vld [vmem:[%s2 + $0xd0] sm:$0xff]
  %v1070 = vld [vmem:[%s2 + $0xd8] sm:$0xff]
  %v1071 = vld [vmem:[%s2 + $0xe0] sm:$0xff]
  %v1072 = vld [vmem:[%s2 + $0xe8] sm:$0xff]
  %v1073 = vld [vmem:[%s2 + $0xf0] sm:$0xff]
  %v1074 = vld [vmem:[%s2 + $0xf8] sm:$0xff]
  %v1075 = vld [vmem:[%s2 + $0x100] sm:$0xff]
  %v1076 = vld [vmem:[%s2 + $0x108] sm:$0xff]
  %v1077 = vld [vmem:[%s2 + $0x110] sm:$0xff]
  %v1078 = vld [vmem:[%s2 + $0x118] sm:$0xff]
  %v1079 = vld [vmem:[%s2 + $0x120] sm:$0xff]
  %v1080 = vld [vmem:[%s2 + $0x128] sm:$0xff]
  %v1081 = vld [vmem:[%s2 + $0x130] sm:$0xff]
  %v1082 = vld [vmem:[%s2 + $0x138] sm:$0xff]
  %v1083 = vld [vmem:[%s2 + $0x140] sm:$0xff]
  %v1084 = vld [vmem:[%s2 + $0x148] sm:$0xff]
  %v1085 = vld [vmem:[%s2 + $0x150] sm:$0xff]
  %v1086 = vld [vmem:[%s2 + $0x158] sm:$0xff]
  %v1087 = vld [vmem:[%s2 + $0x160] sm:$0xff]
  %v1088 = vld [vmem:[%s2 + $0x168] sm:$0xff]
  %v1089 = vld [vmem:[%s2 + $0x170] sm:$0xff]
  %v1090 = vld [vmem:[%s2 + $0x178] sm:$0xff]
  %v1091 = vld [vmem:[%s2 + $0x180] sm:$0xff]
  %v1092 = vld [vmem:[%s2 + $0x188] sm:$0xff]
  %v1093 = vld [vmem:[%s2 + $0x190] sm:$0xff]
  %v1094 = vld [vmem:[%s2 + $0x198] sm:$0xff]
  %v1095 = vld [vmem:[%s2 + $0x1a0] sm:$0xff]
  %v1096 = vld [vmem:[%s2 + $0x1a8] sm:$0xff]
  %v1097 = vld [vmem:[%s2 + $0x1b0] sm:$0xff]
  %v1098 = vld [vmem:[%s2 + $0x1b8] sm:$0xff]
  %v1099 = vld [vmem:[%s2 + $0x1c0] sm:$0xff]
  %v1100 = vld [vmem:[%s2 + $0x1c8] sm:$0xff]
  %v1101 = vld [vmem:[%s2 + $0x1d0] sm:$0xff]
  %v1102 = vld [vmem:[%s2 + $0x1d8] sm:$0xff]
  %v1103 = vld [vmem:[%s2 + $0x1e0] sm:$0xff]
  %v1104 = vld [vmem:[%s2 + $0x1e8] sm:$0xff]
  %v1105 = vld [vmem:[%s2 + $0x1f0] sm:$0xff]
  %v1106 = vld [vmem:[%s2 + $0x1f8] sm:$0xff]
  %v1107 = vld [vmem:[%s2 + $0x200] sm:$0xff]
  %v1108 = vld [vmem:[%s2 + $0x208] sm:$0xff]
  %v1109 = vld [vmem:[%s2 + $0x210] sm:$0xff]
  %v1110 = vld [vmem:[%s2 + $0x218] sm:$0xff]
  %v1111 = vld [vmem:[%s2 + $0x220] sm:$0xff]
  %v1112 = vld [vmem:[%s2 + $0x228] sm:$0xff]
  %v1113 = vld [vmem:[%s2 + $0x230] sm:$0xff]
  %v1114 = vld [vmem:[%s2 + $0x238] sm:$0xff]
  %v1115 = vld [vmem:[%s2 + $0x240] sm:$0xff]
  %v1116 = vld [vmem:[%s2 + $0x248] sm:$0xff]
  %v1117 = vld [vmem:[%s2 + $0x250] sm:$0xff]
  %v1118 = vld [vmem:[%s2 + $0x258] sm:$0xff]
  %v1119 = vld [vmem:[%s2 + $0x260] sm:$0xff]
  %v1120 = vld [vmem:[%s2 + $0x268] sm:$0xff]
  %v1121 = vld [vmem:[%s2 + $0x270] sm:$0xff]
  %v1122 = vld [vmem:[%s2 + $0x278] sm:$0xff]
  %v1123 = vld [vmem:[%s2 + $0x280] sm:$0xff]
  %v1124 = vld [vmem:[%s2 + $0x288] sm:$0xff]
  %v1125 = vld [vmem:[%s2 + $0x290] sm:$0xff]
  %v1126 = vld [vmem:[%s2 + $0x298] sm:$0xff]
  %v1127 = vld [vmem:[%s2 + $0x2a0] sm:$0xff]
  %v1128 = vld [vmem:[%s2 + $0x2a8] sm:$0xff]
  %v1129 = vld [vmem:[%s2 + $0x2b0] sm:$0xff]
  %v1130 = vld [vmem:[%s2 + $0x2b8] sm:$0xff]
  %v1131 = vld [vmem:[%s2 + $0x2c0] sm:$0xff]
  %v1132 = vld [vmem:[%s2 + $0x2c8] sm:$0xff]
  %v1133 = vld [vmem:[%s2 + $0x2d0] sm:$0xff]
  %v1134 = vld [vmem:[%s2 + $0x2d8] sm:$0xff]
  %v1135 = vld [vmem:[%s2 + $0x2e0] sm:$0xff]
  %v1136 = vld [vmem:[%s2 + $0x2e8] sm:$0xff]
  %v1137 = vld [vmem:[%s2 + $0x2f0] sm:$0xff]
  %v1138 = vld [vmem:[%s2 + $0x2f8] sm:$0xff]
  %v1139 = vld [vmem:[%s2 + $0x300] sm:$0xff]
  %v1140 = vld [vmem:[%s2 + $0x308] sm:$0xff]
  %v1141 = vld [vmem:[%s2 + $0x310] sm:$0xff]
  %v1142 = vld [vmem:[%s2 + $0x318] sm:$0xff]
  %v1143 = vld [vmem:[%s2 + $0x320] sm:$0xff]
  %v1144 = vld [vmem:[%s2 + $0x328] sm:$0xff]
  %v1145 = vld [vmem:[%s2 + $0x330] sm:$0xff]
  %v1146 = vld [vmem:[%s2 + $0x338] sm:$0xff]
  %v1147 = vld [vmem:[%s2 + $0x340] sm:$0xff]
  %v1148 = vld [vmem:[%s2 + $0x348] sm:$0xff]
  %v1149 = vld [vmem:[%s2 + $0x350] sm:$0xff]
  %v1150 = vld [vmem:[%s2 + $0x358] sm:$0xff]
  %v1151 = vld [vmem:[%s2 + $0x360] sm:$0xff]
  %v1152 = vld [vmem:[%s2 + $0x368] sm:$0xff]
  %v1153 = vld [vmem:[%s2 + $0x370] sm:$0xff]
  %v1154 = vld [vmem:[%s2 + $0x378] sm:$0xff]
  %v1155 = vld [vmem:[%s2 + $0x380] sm:$0xff]
  %v1156 = vld [vmem:[%s2 + $0x388] sm:$0xff]
  %v1157 = vld [vmem:[%s2 + $0x390] sm:$0xff]
  %v1158 = vld [vmem:[%s2 + $0x398] sm:$0xff]
  %v1159 = vld [vmem:[%s2 + $0x3a0] sm:$0xff]
  %v1160 = vld [vmem:[%s2 + $0x3a8] sm:$0xff]
  %v1161 = vld [vmem:[%s2 + $0x3b0] sm:$0xff]
  %v1162 = vld [vmem:[%s2 + $0x3b8] sm:$0xff]
  %v1163 = vld [vmem:[%s2 + $0x3c0] sm:$0xff]
  %v1164 = vld [vmem:[%s2 + $0x3c8] sm:$0xff]
  %v1165 = vld [vmem:[%s2 + $0x3d0] sm:$0xff]
  %v1166 = vld [vmem:[%s2 + $0x3d8] sm:$0xff]
  %v1167 = vld [vmem:[%s2 + $0x3e0] sm:$0xff]
  %v1168 = vld [vmem:[%s2 + $0x3e8] sm:$0xff]
  %v1169 = vld [vmem:[%s2 + $0x3f0] sm:$0xff]
  %v1170 = vld [vmem:[%s2 + $0x3f8] sm:$0xff]
  %v1171 = vld [vmem:[%s2 + $0x400] sm:$0xff]
  %v1172 = vld [vmem:[%s2 + $0x408] sm:$0xff]
  %v1173 = vld [vmem:[%s2 + $0x410] sm:$0xff]
  %v1174 = vld [vmem:[%s2 + $0x418] sm:$0xff]
  %v1175 = vld [vmem:[%s2 + $0x420] sm:$0xff]
  %v1176 = vld [vmem:[%s2 + $0x428] sm:$0xff]
  %v1177 = vld [vmem:[%s2 + $0x430] sm:$0xff]
  %v1178 = vld [vmem:[%s2 + $0x438] sm:$0xff]
  %v1179 = vld [vmem:[%s2 + $0x440] sm:$0xff]
  %v1180 = vld [vmem:[%s2 + $0x448] sm:$0xff]
  %v1181 = vld [vmem:[%s2 + $0x450] sm:$0xff]
  %v1182 = vld [vmem:[%s2 + $0x458] sm:$0xff]
  %v1183 = vld [vmem:[%s2 + $0x460] sm:$0xff]
  %v1184 = vld [vmem:[%s2 + $0x468] sm:$0xff]
  %v1185 = vld [vmem:[%s2 + $0x470] sm:$0xff]
  %v1186 = vld [vmem:[%s2 + $0x478] sm:$0xff]
  %v1187 = vld [vmem:[%s2 + $0x480] sm:$0xff]
  %v1188 = vld [vmem:[%s2 + $0x488] sm:$0xff]
  %v1189 = vld [vmem:[%s2 + $0x490] sm:$0xff]
  %v1190 = vld [vmem:[%s2 + $0x498] sm:$0xff]
  %v1191 = vld [vmem:[%s2 + $0x4a0] sm:$0xff]
  %v1192 = vld [vmem:[%s2 + $0x4a8] sm:$0xff]
  %v1193 = vld [vmem:[%s2 + $0x4b0] sm:$0xff]
  %v1194 = vld [vmem:[%s2 + $0x4b8] sm:$0xff]
  %v1195 = vld [vmem:[%s2 + $0x4c0] sm:$0xff]
  %v1196 = vld [vmem:[%s2 + $0x4c8] sm:$0xff]
  %v1197 = vld [vmem:[%s2 + $0x4d0] sm:$0xff]
  %v1198 = vld [vmem:[%s2 + $0x4d8] sm:$0xff]
  %v1199 = vld [vmem:[%s2 + $0x4e0] sm:$0xff]
  %v1200 = vld [vmem:[%s2 + $0x4e8] sm:$0xff]
  %v1201 = vld [vmem:[%s2 + $0x4f0] sm:$0xff]
  %v1202 = vld [vmem:[%s2 + $0x4f8] sm:$0xff]
  %v1203 = vld [vmem:[%s2 + $0x500] sm:$0xff]
  %v1204 = vld [vmem:[%s2 + $0x508] sm:$0xff]
  %v1205 = vld [vmem:[%s2 + $0x510] sm:$0xff]
  %v1206 = vld [vmem:[%s2 + $0x518] sm:$0xff]
  %v1207 = vld [vmem:[%s2 + $0x520] sm:$0xff]
  %v1208 = vld [vmem:[%s2 + $0x528] sm:$0xff]
  %v1209 = vld [vmem:[%s2 + $0x530] sm:$0xff]
  %v1210 = vld [vmem:[%s2 + $0x538] sm:$0xff]
  %v1211 = vld [vmem:[%s2 + $0x540] sm:$0xff]
  %v1212 = vld [vmem:[%s2 + $0x548] sm:$0xff]
  %v1213 = vld [vmem:[%s2 + $0x550] sm:$0xff]
  %v1214 = vld [vmem:[%s2 + $0x558] sm:$0xff]
  %v1215 = vld [vmem:[%s2 + $0x560] sm:$0xff]
  %v1216 = vld [vmem:[%s2 + $0x568] sm:$0xff]
  %v1217 = vld [vmem:[%s2 + $0x570] sm:$0xff]
  %v1218 = vld [vmem:[%s2 + $0x578] sm:$0xff]
  %v1219 = vld [vmem:[%s2 + $0x580] sm:$0xff]
  %v1220 = vld [vmem:[%s2 + $0x588] sm:$0xff]
  %v1221 = vld [vmem:[%s2 + $0x590] sm:$0xff]
  %v1222 = vld [vmem:[%s2 + $0x598] sm:$0xff]
  %v1223 = vld [vmem:[%s2 + $0x5a0] sm:$0xff]
  %v1224 = vld [vmem:[%s2 + $0x5a8] sm:$0xff]
  %v1225 = vld [vmem:[%s2 + $0x5b0] sm:$0xff]
  %v1226 = vld [vmem:[%s2 + $0x5b8] sm:$0xff]
  %v1227 = vld [vmem:[%s2 + $0x5c0] sm:$0xff]
  %v1228 = vld [vmem:[%s2 + $0x5c8] sm:$0xff]
  %v1229 = vld [vmem:[%s2 + $0x5d0] sm:$0xff]
  %v1230 = vld [vmem:[%s2 + $0x5d8] sm:$0xff]
  %v1231 = vld [vmem:[%s2 + $0x5e0] sm:$0xff]
  %v1232 = vld [vmem:[%s2 + $0x5e8] sm:$0xff]
  %v1233 = vld [vmem:[%s2 + $0x5f0] sm:$0xff]
  %v1234 = vld [vmem:[%s2 + $0x5f8] sm:$0xff]
  %v1235 = vld [vmem:[%s2 + $0x600] sm:$0xff]
  %v1236 = vld [vmem:[%s2 + $0x608] sm:$0xff]
  %v1237 = vld [vmem:[%s2 + $0x610] sm:$0xff]
  %v1238 = vld [vmem:[%s2 + $0x618] sm:$0xff]
  %v1239 = vld [vmem:[%s2 + $0x620] sm:$0xff]
  %v1240 = vld [vmem:[%s2 + $0x628] sm:$0xff]
  %v1241 = vld [vmem:[%s2 + $0x630] sm:$0xff]
  %v1242 = vld [vmem:[%s2 + $0x638] sm:$0xff]
  %v1243 = vld [vmem:[%s2 + $0x640] sm:$0xff]
  %v1244 = vld [vmem:[%s2 + $0x648] sm:$0xff]
  %v1245 = vld [vmem:[%s2 + $0x650] sm:$0xff]
  %v1246 = vld [vmem:[%s2 + $0x658] sm:$0xff]
  %v1247 = vld [vmem:[%s2 + $0x660] sm:$0xff]
  %v1248 = vld [vmem:[%s2 + $0x668] sm:$0xff]
  %v1249 = vld [vmem:[%s2 + $0x670] sm:$0xff]
  %v1250 = vld [vmem:[%s2 + $0x678] sm:$0xff]
  %v1251 = vld [vmem:[%s2 + $0x680] sm:$0xff]
  %v1252 = vld [vmem:[%s2 + $0x688] sm:$0xff]
  %v1253 = vld [vmem:[%s2 + $0x690] sm:$0xff]
  %v1254 = vld [vmem:[%s2 + $0x698] sm:$0xff]
  %v1255 = vld [vmem:[%s2 + $0x6a0] sm:$0xff]
  %v1256 = vld [vmem:[%s2 + $0x6a8] sm:$0xff]
  %v1257 = vld [vmem:[%s2 + $0x6b0] sm:$0xff]
  %v1258 = vld [vmem:[%s2 + $0x6b8] sm:$0xff]
  %v1259 = vld [vmem:[%s2 + $0x6c0] sm:$0xff]
  %v1260 = vld [vmem:[%s2 + $0x6c8] sm:$0xff]
  %v1261 = vld [vmem:[%s2 + $0x6d0] sm:$0xff]
  %v1262 = vld [vmem:[%s2 + $0x6d8] sm:$0xff]
  %v1263 = vld [vmem:[%s2 + $0x6e0] sm:$0xff]
  %v1264 = vld [vmem:[%s2 + $0x6e8] sm:$0xff]
  %v1265 = vld [vmem:[%s2 + $0x6f0] sm:$0xff]
  %v1266 = vld [vmem:[%s2 + $0x6f8] sm:$0xff]
  %v1267 = vld [vmem:[%s2 + $0x700] sm:$0xff]
  %v1268 = vld [vmem:[%s2 + $0x708] sm:$0xff]
  %v1269 = vld [vmem:[%s2 + $0x710] sm:$0xff]
  %v1270 = vld [vmem:[%s2 + $0x718] sm:$0xff]
  %v1271 = vld [vmem:[%s2 + $0x720] sm:$0xff]
  %v1272 = vld [vmem:[%s2 + $0x728] sm:$0xff]
  %v1273 = vld [vmem:[%s2 + $0x730] sm:$0xff]
  %v1274 = vld [vmem:[%s2 + $0x738] sm:$0xff]
  %v1275 = vld [vmem:[%s2 + $0x740] sm:$0xff]
  %v1276 = vld [vmem:[%s2 + $0x748] sm:$0xff]
  %v1277 = vld [vmem:[%s2 + $0x750] sm:$0xff]
  %v1278 = vld [vmem:[%s2 + $0x758] sm:$0xff]
  %v1279 = vld [vmem:[%s2 + $0x760] sm:$0xff]
  %v1280 = vld [vmem:[%s2 + $0x768] sm:$0xff]
  %v1281 = vld [vmem:[%s2 + $0x770] sm:$0xff]
  %v1282 = vld [vmem:[%s2 + $0x778] sm:$0xff]
  %v1283 = vld [vmem:[%s2 + $0x780] sm:$0xff]
  %v1284 = vld [vmem:[%s2 + $0x788] sm:$0xff]
  %v1285 = vld [vmem:[%s2 + $0x790] sm:$0xff]
  %v1286 = vld [vmem:[%s2 + $0x798] sm:$0xff]
  %v1287 = vld [vmem:[%s2 + $0x7a0] sm:$0xff]
  %v1288 = vld [vmem:[%s2 + $0x7a8] sm:$0xff]
  %v1289 = vld [vmem:[%s2 + $0x7b0] sm:$0xff]
  %v1290 = vld [vmem:[%s2 + $0x7b8] sm:$0xff]
  %v1291 = vld [vmem:[%s2 + $0x7c0] sm:$0xff]
  %v1292 = vld [vmem:[%s2 + $0x7c8] sm:$0xff]
  %v1293 = vld [vmem:[%s2 + $0x7d0] sm:$0xff]
  %v1294 = vld [vmem:[%s2 + $0x7d8] sm:$0xff]
  %v1295 = vld [vmem:[%s2 + $0x7e0] sm:$0xff]
  %v1296 = vld [vmem:[%s2 + $0x7e8] sm:$0xff]
  %v1297 = vld [vmem:[%s2 + $0x7f0] sm:$0xff]
  %v1298 = vld [vmem:[%s2 + $0x7f8] sm:$0xff]
  %1299 = vst.msk [vmem:[%s5] sm:$0xff] %vm273, %v1043
  %1300 = vst.msk [vmem:[%s5 + $0x8] sm:$0xff] %vm273, %v1044
  %1301 = vst.msk [vmem:[%s5 + $0x10] sm:$0xff] %vm273, %v1045
  %1302 = vst.msk [vmem:[%s5 + $0x18] sm:$0xff] %vm273, %v1046
  %1303 = vst.msk [vmem:[%s5 + $0x20] sm:$0xff] %vm273, %v1047
  %1304 = vst.msk [vmem:[%s5 + $0x28] sm:$0xff] %vm273, %v1048
  %1305 = vst.msk [vmem:[%s5 + $0x30] sm:$0xff] %vm273, %v1049
  %1306 = vst.msk [vmem:[%s5 + $0x38] sm:$0xff] %vm273, %v1050
  %1307 = vst.msk [vmem:[%s5 + $0x40] sm:$0xff] %vm273, %v1051
  %1308 = vst.msk [vmem:[%s5 + $0x48] sm:$0xff] %vm273, %v1052
  %1309 = vst.msk [vmem:[%s5 + $0x50] sm:$0xff] %vm273, %v1053
  %1310 = vst.msk [vmem:[%s5 + $0x58] sm:$0xff] %vm273, %v1054
  %1311 = vst.msk [vmem:[%s5 + $0x60] sm:$0xff] %vm273, %v1055
  %1312 = vst.msk [vmem:[%s5 + $0x68] sm:$0xff] %vm273, %v1056
  %1313 = vst.msk [vmem:[%s5 + $0x70] sm:$0xff] %vm273, %v1057
  %1314 = vst.msk [vmem:[%s5 + $0x78] sm:$0xff] %vm273, %v1058
  %1315 = vst.msk [vmem:[%s5 + $0x80] sm:$0xff] %vm273, %v1059
  %1316 = vst.msk [vmem:[%s5 + $0x88] sm:$0xff] %vm273, %v1060
  %1317 = vst.msk [vmem:[%s5 + $0x90] sm:$0xff] %vm273, %v1061
  %1318 = vst.msk [vmem:[%s5 + $0x98] sm:$0xff] %vm273, %v1062
  %1319 = vst.msk [vmem:[%s5 + $0xa0] sm:$0xff] %vm273, %v1063
  %1320 = vst.msk [vmem:[%s5 + $0xa8] sm:$0xff] %vm273, %v1064
  %1321 = vst.msk [vmem:[%s5 + $0xb0] sm:$0xff] %vm273, %v1065
  %1322 = vst.msk [vmem:[%s5 + $0xb8] sm:$0xff] %vm273, %v1066
  %1323 = vst.msk [vmem:[%s5 + $0xc0] sm:$0xff] %vm273, %v1067
  %1324 = vst.msk [vmem:[%s5 + $0xc8] sm:$0xff] %vm273, %v1068
  %1325 = vst.msk [vmem:[%s5 + $0xd0] sm:$0xff] %vm273, %v1069
  %1326 = vst.msk [vmem:[%s5 + $0xd8] sm:$0xff] %vm273, %v1070
  %1327 = vst.msk [vmem:[%s5 + $0xe0] sm:$0xff] %vm273, %v1071
  %1328 = vst.msk [vmem:[%s5 + $0xe8] sm:$0xff] %vm273, %v1072
  %1329 = vst.msk [vmem:[%s5 + $0xf0] sm:$0xff] %vm273, %v1073
  %1330 = vst.msk [vmem:[%s5 + $0xf8] sm:$0xff] %vm273, %v1074
  %1331 = vst.msk [vmem:[%s5 + $0x100] sm:$0xff] %vm273, %v1075
  %1332 = vst.msk [vmem:[%s5 + $0x108] sm:$0xff] %vm273, %v1076
  %1333 = vst.msk [vmem:[%s5 + $0x110] sm:$0xff] %vm273, %v1077
  %1334 = vst.msk [vmem:[%s5 + $0x118] sm:$0xff] %vm273, %v1078
  %1335 = vst.msk [vmem:[%s5 + $0x120] sm:$0xff] %vm273, %v1079
  %1336 = vst.msk [vmem:[%s5 + $0x128] sm:$0xff] %vm273, %v1080
  %1337 = vst.msk [vmem:[%s5 + $0x130] sm:$0xff] %vm273, %v1081
  %1338 = vst.msk [vmem:[%s5 + $0x138] sm:$0xff] %vm273, %v1082
  %1339 = vst.msk [vmem:[%s5 + $0x140] sm:$0xff] %vm273, %v1083
  %1340 = vst.msk [vmem:[%s5 + $0x148] sm:$0xff] %vm273, %v1084
  %1341 = vst.msk [vmem:[%s5 + $0x150] sm:$0xff] %vm273, %v1085
  %1342 = vst.msk [vmem:[%s5 + $0x158] sm:$0xff] %vm273, %v1086
  %1343 = vst.msk [vmem:[%s5 + $0x160] sm:$0xff] %vm273, %v1087
  %1344 = vst.msk [vmem:[%s5 + $0x168] sm:$0xff] %vm273, %v1088
  %1345 = vst.msk [vmem:[%s5 + $0x170] sm:$0xff] %vm273, %v1089
  %1346 = vst.msk [vmem:[%s5 + $0x178] sm:$0xff] %vm273, %v1090
  %1347 = vst.msk [vmem:[%s5 + $0x180] sm:$0xff] %vm273, %v1091
  %1348 = vst.msk [vmem:[%s5 + $0x188] sm:$0xff] %vm273, %v1092
  %1349 = vst.msk [vmem:[%s5 + $0x190] sm:$0xff] %vm273, %v1093
  %1350 = vst.msk [vmem:[%s5 + $0x198] sm:$0xff] %vm273, %v1094
  %1351 = vst.msk [vmem:[%s5 + $0x1a0] sm:$0xff] %vm273, %v1095
  %1352 = vst.msk [vmem:[%s5 + $0x1a8] sm:$0xff] %vm273, %v1096
  %1353 = vst.msk [vmem:[%s5 + $0x1b0] sm:$0xff] %vm273, %v1097
  %1354 = vst.msk [vmem:[%s5 + $0x1b8] sm:$0xff] %vm273, %v1098
  %1355 = vst.msk [vmem:[%s5 + $0x1c0] sm:$0xff] %vm273, %v1099
  %1356 = vst.msk [vmem:[%s5 + $0x1c8] sm:$0xff] %vm273, %v1100
  %1357 = vst.msk [vmem:[%s5 + $0x1d0] sm:$0xff] %vm273, %v1101
  %1358 = vst.msk [vmem:[%s5 + $0x1d8] sm:$0xff] %vm273, %v1102
  %1359 = vst.msk [vmem:[%s5 + $0x1e0] sm:$0xff] %vm273, %v1103
  %1360 = vst.msk [vmem:[%s5 + $0x1e8] sm:$0xff] %vm273, %v1104
  %1361 = vst.msk [vmem:[%s5 + $0x1f0] sm:$0xff] %vm273, %v1105
  %1362 = vst.msk [vmem:[%s5 + $0x1f8] sm:$0xff] %vm273, %v1106
  %1363 = vst.msk [vmem:[%s5 + $0x200] sm:$0xff] %vm273, %v1107
  %1364 = vst.msk [vmem:[%s5 + $0x208] sm:$0xff] %vm273, %v1108
  %1365 = vst.msk [vmem:[%s5 + $0x210] sm:$0xff] %vm273, %v1109
  %1366 = vst.msk [vmem:[%s5 + $0x218] sm:$0xff] %vm273, %v1110
  %1367 = vst.msk [vmem:[%s5 + $0x220] sm:$0xff] %vm273, %v1111
  %1368 = vst.msk [vmem:[%s5 + $0x228] sm:$0xff] %vm273, %v1112
  %1369 = vst.msk [vmem:[%s5 + $0x230] sm:$0xff] %vm273, %v1113
  %1370 = vst.msk [vmem:[%s5 + $0x238] sm:$0xff] %vm273, %v1114
  %1371 = vst.msk [vmem:[%s5 + $0x240] sm:$0xff] %vm273, %v1115
  %1372 = vst.msk [vmem:[%s5 + $0x248] sm:$0xff] %vm273, %v1116
  %1373 = vst.msk [vmem:[%s5 + $0x250] sm:$0xff] %vm273, %v1117
  %1374 = vst.msk [vmem:[%s5 + $0x258] sm:$0xff] %vm273, %v1118
  %1375 = vst.msk [vmem:[%s5 + $0x260] sm:$0xff] %vm273, %v1119
  %1376 = vst.msk [vmem:[%s5 + $0x268] sm:$0xff] %vm273, %v1120
  %1377 = vst.msk [vmem:[%s5 + $0x270] sm:$0xff] %vm273, %v1121
  %1378 = vst.msk [vmem:[%s5 + $0x278] sm:$0xff] %vm273, %v1122
  %1379 = vst.msk [vmem:[%s5 + $0x280] sm:$0xff] %vm273, %v1123
  %1380 = vst.msk [vmem:[%s5 + $0x288] sm:$0xff] %vm273, %v1124
  %1381 = vst.msk [vmem:[%s5 + $0x290] sm:$0xff] %vm273, %v1125
  %1382 = vst.msk [vmem:[%s5 + $0x298] sm:$0xff] %vm273, %v1126
  %1383 = vst.msk [vmem:[%s5 + $0x2a0] sm:$0xff] %vm273, %v1127
  %1384 = vst.msk [vmem:[%s5 + $0x2a8] sm:$0xff] %vm273, %v1128
  %1385 = vst.msk [vmem:[%s5 + $0x2b0] sm:$0xff] %vm273, %v1129
  %1386 = vst.msk [vmem:[%s5 + $0x2b8] sm:$0xff] %vm273, %v1130
  %1387 = vst.msk [vmem:[%s5 + $0x2c0] sm:$0xff] %vm273, %v1131
  %1388 = vst.msk [vmem:[%s5 + $0x2c8] sm:$0xff] %vm273, %v1132
  %1389 = vst.msk [vmem:[%s5 + $0x2d0] sm:$0xff] %vm273, %v1133
  %1390 = vst.msk [vmem:[%s5 + $0x2d8] sm:$0xff] %vm273, %v1134
  %1391 = vst.msk [vmem:[%s5 + $0x2e0] sm:$0xff] %vm273, %v1135
  %1392 = vst.msk [vmem:[%s5 + $0x2e8] sm:$0xff] %vm273, %v1136
  %1393 = vst.msk [vmem:[%s5 + $0x2f0] sm:$0xff] %vm273, %v1137
  %1394 = vst.msk [vmem:[%s5 + $0x2f8] sm:$0xff] %vm273, %v1138
  %1395 = vst.msk [vmem:[%s5 + $0x300] sm:$0xff] %vm273, %v1139
  %1396 = vst.msk [vmem:[%s5 + $0x308] sm:$0xff] %vm273, %v1140
  %1397 = vst.msk [vmem:[%s5 + $0x310] sm:$0xff] %vm273, %v1141
  %1398 = vst.msk [vmem:[%s5 + $0x318] sm:$0xff] %vm273, %v1142
  %1399 = vst.msk [vmem:[%s5 + $0x320] sm:$0xff] %vm273, %v1143
  %1400 = vst.msk [vmem:[%s5 + $0x328] sm:$0xff] %vm273, %v1144
  %1401 = vst.msk [vmem:[%s5 + $0x330] sm:$0xff] %vm273, %v1145
  %1402 = vst.msk [vmem:[%s5 + $0x338] sm:$0xff] %vm273, %v1146
  %1403 = vst.msk [vmem:[%s5 + $0x340] sm:$0xff] %vm273, %v1147
  %1404 = vst.msk [vmem:[%s5 + $0x348] sm:$0xff] %vm273, %v1148
  %1405 = vst.msk [vmem:[%s5 + $0x350] sm:$0xff] %vm273, %v1149
  %1406 = vst.msk [vmem:[%s5 + $0x358] sm:$0xff] %vm273, %v1150
  %1407 = vst.msk [vmem:[%s5 + $0x360] sm:$0xff] %vm273, %v1151
  %1408 = vst.msk [vmem:[%s5 + $0x368] sm:$0xff] %vm273, %v1152
  %1409 = vst.msk [vmem:[%s5 + $0x370] sm:$0xff] %vm273, %v1153
  %1410 = vst.msk [vmem:[%s5 + $0x378] sm:$0xff] %vm273, %v1154
  %1411 = vst.msk [vmem:[%s5 + $0x380] sm:$0xff] %vm273, %v1155
  %1412 = vst.msk [vmem:[%s5 + $0x388] sm:$0xff] %vm273, %v1156
  %1413 = vst.msk [vmem:[%s5 + $0x390] sm:$0xff] %vm273, %v1157
  %1414 = vst.msk [vmem:[%s5 + $0x398] sm:$0xff] %vm273, %v1158
  %1415 = vst.msk [vmem:[%s5 + $0x3a0] sm:$0xff] %vm273, %v1159
  %1416 = vst.msk [vmem:[%s5 + $0x3a8] sm:$0xff] %vm273, %v1160
  %1417 = vst.msk [vmem:[%s5 + $0x3b0] sm:$0xff] %vm273, %v1161
  %1418 = vst.msk [vmem:[%s5 + $0x3b8] sm:$0xff] %vm273, %v1162
  %1419 = vst.msk [vmem:[%s5 + $0x3c0] sm:$0xff] %vm273, %v1163
  %1420 = vst.msk [vmem:[%s5 + $0x3c8] sm:$0xff] %vm273, %v1164
  %1421 = vst.msk [vmem:[%s5 + $0x3d0] sm:$0xff] %vm273, %v1165
  %1422 = vst.msk [vmem:[%s5 + $0x3d8] sm:$0xff] %vm273, %v1166
  %1423 = vst.msk [vmem:[%s5 + $0x3e0] sm:$0xff] %vm273, %v1167
  %1424 = vst.msk [vmem:[%s5 + $0x3e8] sm:$0xff] %vm273, %v1168
  %1425 = vst.msk [vmem:[%s5 + $0x3f0] sm:$0xff] %vm273, %v1169
  %1426 = vst.msk [vmem:[%s5 + $0x3f8] sm:$0xff] %vm273, %v1170
  %1427 = vst.msk [vmem:[%s5 + $0x400] sm:$0xff] %vm273, %v1171
  %1428 = vst.msk [vmem:[%s5 + $0x408] sm:$0xff] %vm273, %v1172
  %1429 = vst.msk [vmem:[%s5 + $0x410] sm:$0xff] %vm273, %v1173
  %1430 = vst.msk [vmem:[%s5 + $0x418] sm:$0xff] %vm273, %v1174
  %1431 = vst.msk [vmem:[%s5 + $0x420] sm:$0xff] %vm273, %v1175
  %1432 = vst.msk [vmem:[%s5 + $0x428] sm:$0xff] %vm273, %v1176
  %1433 = vst.msk [vmem:[%s5 + $0x430] sm:$0xff] %vm273, %v1177
  %1434 = vst.msk [vmem:[%s5 + $0x438] sm:$0xff] %vm273, %v1178
  %1435 = vst.msk [vmem:[%s5 + $0x440] sm:$0xff] %vm273, %v1179
  %1436 = vst.msk [vmem:[%s5 + $0x448] sm:$0xff] %vm273, %v1180
  %1437 = vst.msk [vmem:[%s5 + $0x450] sm:$0xff] %vm273, %v1181
  %1438 = vst.msk [vmem:[%s5 + $0x458] sm:$0xff] %vm273, %v1182
  %1439 = vst.msk [vmem:[%s5 + $0x460] sm:$0xff] %vm273, %v1183
  %1440 = vst.msk [vmem:[%s5 + $0x468] sm:$0xff] %vm273, %v1184
  %1441 = vst.msk [vmem:[%s5 + $0x470] sm:$0xff] %vm273, %v1185
  %1442 = vst.msk [vmem:[%s5 + $0x478] sm:$0xff] %vm273, %v1186
  %1443 = vst.msk [vmem:[%s5 + $0x480] sm:$0xff] %vm273, %v1187
  %1444 = vst.msk [vmem:[%s5 + $0x488] sm:$0xff] %vm273, %v1188
  %1445 = vst.msk [vmem:[%s5 + $0x490] sm:$0xff] %vm273, %v1189
  %1446 = vst.msk [vmem:[%s5 + $0x498] sm:$0xff] %vm273, %v1190
  %1447 = vst.msk [vmem:[%s5 + $0x4a0] sm:$0xff] %vm273, %v1191
  %1448 = vst.msk [vmem:[%s5 + $0x4a8] sm:$0xff] %vm273, %v1192
  %1449 = vst.msk [vmem:[%s5 + $0x4b0] sm:$0xff] %vm273, %v1193
  %1450 = vst.msk [vmem:[%s5 + $0x4b8] sm:$0xff] %vm273, %v1194
  %1451 = vst.msk [vmem:[%s5 + $0x4c0] sm:$0xff] %vm273, %v1195
  %1452 = vst.msk [vmem:[%s5 + $0x4c8] sm:$0xff] %vm273, %v1196
  %1453 = vst.msk [vmem:[%s5 + $0x4d0] sm:$0xff] %vm273, %v1197
  %1454 = vst.msk [vmem:[%s5 + $0x4d8] sm:$0xff] %vm273, %v1198
  %1455 = vst.msk [vmem:[%s5 + $0x4e0] sm:$0xff] %vm273, %v1199
  %1456 = vst.msk [vmem:[%s5 + $0x4e8] sm:$0xff] %vm273, %v1200
  %1457 = vst.msk [vmem:[%s5 + $0x4f0] sm:$0xff] %vm273, %v1201
  %1458 = vst.msk [vmem:[%s5 + $0x4f8] sm:$0xff] %vm273, %v1202
  %1459 = vst.msk [vmem:[%s5 + $0x500] sm:$0xff] %vm273, %v1203
  %1460 = vst.msk [vmem:[%s5 + $0x508] sm:$0xff] %vm273, %v1204
  %1461 = vst.msk [vmem:[%s5 + $0x510] sm:$0xff] %vm273, %v1205
  %1462 = vst.msk [vmem:[%s5 + $0x518] sm:$0xff] %vm273, %v1206
  %1463 = vst.msk [vmem:[%s5 + $0x520] sm:$0xff] %vm273, %v1207
  %1464 = vst.msk [vmem:[%s5 + $0x528] sm:$0xff] %vm273, %v1208
  %1465 = vst.msk [vmem:[%s5 + $0x530] sm:$0xff] %vm273, %v1209
  %1466 = vst.msk [vmem:[%s5 + $0x538] sm:$0xff] %vm273, %v1210
  %1467 = vst.msk [vmem:[%s5 + $0x540] sm:$0xff] %vm273, %v1211
  %1468 = vst.msk [vmem:[%s5 + $0x548] sm:$0xff] %vm273, %v1212
  %1469 = vst.msk [vmem:[%s5 + $0x550] sm:$0xff] %vm273, %v1213
  %1470 = vst.msk [vmem:[%s5 + $0x558] sm:$0xff] %vm273, %v1214
  %1471 = vst.msk [vmem:[%s5 + $0x560] sm:$0xff] %vm273, %v1215
  %1472 = vst.msk [vmem:[%s5 + $0x568] sm:$0xff] %vm273, %v1216
  %1473 = vst.msk [vmem:[%s5 + $0x570] sm:$0xff] %vm273, %v1217
  %1474 = vst.msk [vmem:[%s5 + $0x578] sm:$0xff] %vm273, %v1218
  %1475 = vst.msk [vmem:[%s5 + $0x580] sm:$0xff] %vm273, %v1219
  %1476 = vst.msk [vmem:[%s5 + $0x588] sm:$0xff] %vm273, %v1220
  %1477 = vst.msk [vmem:[%s5 + $0x590] sm:$0xff] %vm273, %v1221
  %1478 = vst.msk [vmem:[%s5 + $0x598] sm:$0xff] %vm273, %v1222
  %1479 = vst.msk [vmem:[%s5 + $0x5a0] sm:$0xff] %vm273, %v1223
  %1480 = vst.msk [vmem:[%s5 + $0x5a8] sm:$0xff] %vm273, %v1224
  %1481 = vst.msk [vmem:[%s5 + $0x5b0] sm:$0xff] %vm273, %v1225
  %1482 = vst.msk [vmem:[%s5 + $0x5b8] sm:$0xff] %vm273, %v1226
  %1483 = vst.msk [vmem:[%s5 + $0x5c0] sm:$0xff] %vm273, %v1227
  %1484 = vst.msk [vmem:[%s5 + $0x5c8] sm:$0xff] %vm273, %v1228
  %1485 = vst.msk [vmem:[%s5 + $0x5d0] sm:$0xff] %vm273, %v1229
  %1486 = vst.msk [vmem:[%s5 + $0x5d8] sm:$0xff] %vm273, %v1230
  %1487 = vst.msk [vmem:[%s5 + $0x5e0] sm:$0xff] %vm273, %v1231
  %1488 = vst.msk [vmem:[%s5 + $0x5e8] sm:$0xff] %vm273, %v1232
  %1489 = vst.msk [vmem:[%s5 + $0x5f0] sm:$0xff] %vm273, %v1233
  %1490 = vst.msk [vmem:[%s5 + $0x5f8] sm:$0xff] %vm273, %v1234
  %1491 = vst.msk [vmem:[%s5 + $0x600] sm:$0xff] %vm273, %v1235
  %1492 = vst.msk [vmem:[%s5 + $0x608] sm:$0xff] %vm273, %v1236
  %1493 = vst.msk [vmem:[%s5 + $0x610] sm:$0xff] %vm273, %v1237
  %1494 = vst.msk [vmem:[%s5 + $0x618] sm:$0xff] %vm273, %v1238
  %1495 = vst.msk [vmem:[%s5 + $0x620] sm:$0xff] %vm273, %v1239
  %1496 = vst.msk [vmem:[%s5 + $0x628] sm:$0xff] %vm273, %v1240
  %1497 = vst.msk [vmem:[%s5 + $0x630] sm:$0xff] %vm273, %v1241
  %1498 = vst.msk [vmem:[%s5 + $0x638] sm:$0xff] %vm273, %v1242
  %1499 = vst.msk [vmem:[%s5 + $0x640] sm:$0xff] %vm273, %v1243
  %1500 = vst.msk [vmem:[%s5 + $0x648] sm:$0xff] %vm273, %v1244
  %1501 = vst.msk [vmem:[%s5 + $0x650] sm:$0xff] %vm273, %v1245
  %1502 = vst.msk [vmem:[%s5 + $0x658] sm:$0xff] %vm273, %v1246
  %1503 = vst.msk [vmem:[%s5 + $0x660] sm:$0xff] %vm273, %v1247
  %1504 = vst.msk [vmem:[%s5 + $0x668] sm:$0xff] %vm273, %v1248
  %1505 = vst.msk [vmem:[%s5 + $0x670] sm:$0xff] %vm273, %v1249
  %1506 = vst.msk [vmem:[%s5 + $0x678] sm:$0xff] %vm273, %v1250
  %1507 = vst.msk [vmem:[%s5 + $0x680] sm:$0xff] %vm273, %v1251
  %1508 = vst.msk [vmem:[%s5 + $0x688] sm:$0xff] %vm273, %v1252
  %1509 = vst.msk [vmem:[%s5 + $0x690] sm:$0xff] %vm273, %v1253
  %1510 = vst.msk [vmem:[%s5 + $0x698] sm:$0xff] %vm273, %v1254
  %1511 = vst.msk [vmem:[%s5 + $0x6a0] sm:$0xff] %vm273, %v1255
  %1512 = vst.msk [vmem:[%s5 + $0x6a8] sm:$0xff] %vm273, %v1256
  %1513 = vst.msk [vmem:[%s5 + $0x6b0] sm:$0xff] %vm273, %v1257
  %1514 = vst.msk [vmem:[%s5 + $0x6b8] sm:$0xff] %vm273, %v1258
  %1515 = vst.msk [vmem:[%s5 + $0x6c0] sm:$0xff] %vm273, %v1259
  %1516 = vst.msk [vmem:[%s5 + $0x6c8] sm:$0xff] %vm273, %v1260
  %1517 = vst.msk [vmem:[%s5 + $0x6d0] sm:$0xff] %vm273, %v1261
  %1518 = vst.msk [vmem:[%s5 + $0x6d8] sm:$0xff] %vm273, %v1262
  %1519 = vst.msk [vmem:[%s5 + $0x6e0] sm:$0xff] %vm273, %v1263
  %1520 = vst.msk [vmem:[%s5 + $0x6e8] sm:$0xff] %vm273, %v1264
  %1521 = vst.msk [vmem:[%s5 + $0x6f0] sm:$0xff] %vm273, %v1265
  %1522 = vst.msk [vmem:[%s5 + $0x6f8] sm:$0xff] %vm273, %v1266
  %1523 = vst.msk [vmem:[%s5 + $0x700] sm:$0xff] %vm273, %v1267
  %1524 = vst.msk [vmem:[%s5 + $0x708] sm:$0xff] %vm273, %v1268
  %1525 = vst.msk [vmem:[%s5 + $0x710] sm:$0xff] %vm273, %v1269
  %1526 = vst.msk [vmem:[%s5 + $0x718] sm:$0xff] %vm273, %v1270
  %1527 = vst.msk [vmem:[%s5 + $0x720] sm:$0xff] %vm273, %v1271
  %1528 = vst.msk [vmem:[%s5 + $0x728] sm:$0xff] %vm273, %v1272
  %1529 = vst.msk [vmem:[%s5 + $0x730] sm:$0xff] %vm273, %v1273
  %1530 = vst.msk [vmem:[%s5 + $0x738] sm:$0xff] %vm273, %v1274
  %1531 = vst.msk [vmem:[%s5 + $0x740] sm:$0xff] %vm273, %v1275
  %1532 = vst.msk [vmem:[%s5 + $0x748] sm:$0xff] %vm273, %v1276
  %1533 = vst.msk [vmem:[%s5 + $0x750] sm:$0xff] %vm273, %v1277
  %1534 = vst.msk [vmem:[%s5 + $0x758] sm:$0xff] %vm273, %v1278
  %1535 = vst.msk [vmem:[%s5 + $0x760] sm:$0xff] %vm273, %v1279
  %1536 = vst.msk [vmem:[%s5 + $0x768] sm:$0xff] %vm273, %v1280
  %1537 = vst.msk [vmem:[%s5 + $0x770] sm:$0xff] %vm273, %v1281
  %1538 = vst.msk [vmem:[%s5 + $0x778] sm:$0xff] %vm273, %v1282
  %1539 = vst.msk [vmem:[%s5 + $0x780] sm:$0xff] %vm273, %v1283
  %1540 = vst.msk [vmem:[%s5 + $0x788] sm:$0xff] %vm273, %v1284
  %1541 = vst.msk [vmem:[%s5 + $0x790] sm:$0xff] %vm273, %v1285
  %1542 = vst.msk [vmem:[%s5 + $0x798] sm:$0xff] %vm273, %v1286
  %1543 = vst.msk [vmem:[%s5 + $0x7a0] sm:$0xff] %vm273, %v1287
  %1544 = vst.msk [vmem:[%s5 + $0x7a8] sm:$0xff] %vm273, %v1288
  %1545 = vst.msk [vmem:[%s5 + $0x7b0] sm:$0xff] %vm273, %v1289
  %1546 = vst.msk [vmem:[%s5 + $0x7b8] sm:$0xff] %vm273, %v1290
  %1547 = vst.msk [vmem:[%s5 + $0x7c0] sm:$0xff] %vm273, %v1291
  %1548 = vst.msk [vmem:[%s5 + $0x7c8] sm:$0xff] %vm273, %v1292
  %1549 = vst.msk [vmem:[%s5 + $0x7d0] sm:$0xff] %vm273, %v1293
  %1550 = vst.msk [vmem:[%s5 + $0x7d8] sm:$0xff] %vm273, %v1294
  %1551 = vst.msk [vmem:[%s5 + $0x7e0] sm:$0xff] %vm273, %v1295
  %1552 = vst.msk [vmem:[%s5 + $0x7e8] sm:$0xff] %vm273, %v1296
  %1553 = vst.msk [vmem:[%s5 + $0x7f0] sm:$0xff] %vm273, %v1297
  %1554 = vst.msk [vmem:[%s5 + $0x7f8] sm:$0xff] %vm273, %v1298
  // Predicated region
  $region14: #{identity_passthrough.1} parent=0 // pred_check
    _
  $region15: #{identity_passthrough.1} parent=0 // pred_check_branch
    %1556 = sbr.rel (0) target = $region17
  $region16: #{identity_passthrough.1} parent=0 // pred_region
    _
  $region17: #{identity_passthrough.1} parent=0 // pred_fallthru
    _
  // Predicated region
  $region18: #{identity_passthrough.1} parent=0 // pred_check
    _
  $region19: #{identity_passthrough.1} parent=0 // pred_check_branch
    %1558 = sbr.rel (0) target = $region21
  $region20: #{identity_passthrough.1} parent=0 // pred_region
    _
  $region21: #{identity_passthrough.1} parent=0 // pred_fallthru
    _
  // Predicated region
  $region22: #{identity_passthrough.1} parent=0 // pred_check
    _
  $region23: #{identity_passthrough.1} parent=0 // pred_check_branch
    %1560 = sbr.rel (0) target = $region25
  $region24: #{identity_passthrough.1} parent=0 // pred_region
    _
  $region25: #{identity_passthrough.1} parent=0 // pred_fallthru
    _
  // Predicated region
  $region26: #{identity_passthrough.1} parent=0 // pred_check
    _
  $region27: #{identity_passthrough.1} parent=0 // pred_check_branch
    %1562 = sbr.rel (0) target = $region29
  $region28: #{identity_passthrough.1} parent=0 // pred_region
    _
  $region29: #{identity_passthrough.1} parent=0 // pred_fallthru
    _
  // Predicated region
  $region30: #{identity_passthrough.1} parent=0 // pred_check
    _
  $region31: #{identity_passthrough.1} parent=0 // pred_check_branch
    %1564 = sbr.rel (0) target = $region33
  $region32: #{identity_passthrough.1} parent=0 // pred_region
    _
  $region33: #{identity_passthrough.1} parent=0 // pred_fallthru
    _
  // Predicated region
  $region34: #{identity_passthrough.1} parent=0 // pred_check
    _
  $region35: #{identity_passthrough.1} parent=0 // pred_check_branch
    %1566 = sbr.rel (0) target = $region37
  $region36: #{identity_passthrough.1} parent=0 // pred_region
    _
  $region37: #{identity_passthrough.1} parent=0 // pred_fallthru
    _

</llo_original>
